<compile_context>
chip_gen: v7x
topology: tpu7x:2x2x1
jax: 0.10.0
libtpu: 0.0.40
codegen_flags: <defaults>
</compile_context>

<pallas_src>
import functools

import jax
import jax.numpy as jnp
from jax.experimental import pallas as pl
from jax.experimental.pallas import tpu as pltpu

EPS = 1e-5                       # nn.BatchNorm1d default
VMEM_LIMIT = 48 * 1024 * 1024    # safe on v7x (64 MiB); raise toward ~100 MiB on v5e/v6e


def _cparams():
    return pltpu.CompilerParams(
        dimension_semantics=("parallel",),
        vmem_limit_bytes=VMEM_LIMIT)


# ---------------------------------------------------------------------------
# Weight prep (hoisted out of the forward pass)
# ---------------------------------------------------------------------------
def prep_conv_weight(w_oik, stride):
    """(Cout, Cin, K=3) torch weight -> MXU-ready LHS weight."""
    taps = jnp.transpose(w_oik, (2, 1, 0)).astype(jnp.float32)        # (3, Cin, Cout)
    if stride == 1:
        return taps
    # stride 2: pack taps so both dots read the free phase-reshaped activation
    # rows j   hold [x[2j], x[2j+1]]  -> taps 1 and 2
    # rows j-1 hold [x[2j-2], x[2j-1]] -> tap 0 (first Cin rows zeroed out)
    w12 = jnp.concatenate([taps[1], taps[2]], axis=0)                 # (2Cin, Cout)
    w0e = jnp.concatenate([jnp.zeros_like(taps[0]), taps[0]], axis=0)  # (2Cin, Cout)
    return jnp.stack([w12, w0e])                                      # (2, 2Cin, Cout)


def prepare_params(w1, w2, g1, b1, g2, b2, stride):
    return {"w1": w1, "w2": w2,                      # raw (reference only)
            "w1l": prep_conv_weight(w1, stride),
            "w2l": prep_conv_weight(w2, 1),
            "g1": g1, "b1": b1, "g2": g2, "b2": b2}


# ---------------------------------------------------------------------------
# K1 / K2: conv(k=3, pad=1) [+ fused input BN-apply + ReLU] + BN partial stats
# ---------------------------------------------------------------------------
def conv3_bn_stats(x_nlc, w_lhs, stride, in_scale=None, in_shift=None,
                   y_dtype=jnp.bfloat16):
    """Fused [optional per-channel affine + ReLU on the input] -> conv1d -> stats.

    x_nlc : (N, L, Cin) activation (any float dtype)
    w_lhs : stride 1 -> (3, Cin, Cout); stride 2 -> (2, 2*Cin, Cout)
    Returns y (N, Lo, Cout) in y_dtype and stats (N, 2, Cout) f32
    ([sum, sum_sq] per sample over length, from the f32 accumulator).
    """
    N, L, Cin = x_nlc.shape
    Cout = w_lhs.shape[-1]
    fuse_in = in_scale is not None
    assert not (fuse_in and stride != 1)
    Lo = (L - 1) // stride + 1

    if stride == 1:
        assert w_lhs.shape == (3, Cin, Cout)
        x_in, Lw, Cw = x_nlc, L, Cin
    elif stride == 2:
        # TODO(synk): support odd L (needs one extra zero column before reshape).
        assert L % 2 == 0 and w_lhs.shape == (2, 2 * Cin, Cout)
        x_in, Lw, Cw = x_nlc.reshape(N, Lo, 2 * Cin), Lo, 2 * Cin   # free reshape
    else:
        raise ValueError(f"unsupported stride {stride}")

    PAD0 = 8                          # sublane-aligned base row for the halo
    rows = Lw + 2 * PAD0

    def kernel(*refs):
        if fuse_in:
            x_ref, w_ref, sc_ref, sh_ref, y_ref, st_ref, pad_ref = refs
        else:
            x_ref, w_ref, y_ref, st_ref, pad_ref = refs

        xv = x_ref[0].astype(jnp.float32)                      # (Lw, Cw)
        if fuse_in:                                            # BN1-apply + ReLU
            xv = jnp.maximum(xv * sc_ref[...] + sh_ref[...], 0.0)

        # zero halo + activation in an aligned VMEM scratch (no HBM pad pass)
        pad_ref[...] = jnp.zeros((rows, Cw), jnp.float32)
        pad_ref[pl.ds(PAD0, Lw), :] = xv

        if stride == 1:
            acc = (jnp.dot(pad_ref[pl.ds(PAD0 - 1, Lo), :], w_ref[0],
                           preferred_element_type=jnp.float32)
                   + jnp.dot(xv, w_ref[1], preferred_element_type=jnp.float32)
                   + jnp.dot(pad_ref[pl.ds(PAD0 + 1, Lo), :], w_ref[2],
                             preferred_element_type=jnp.float32))
        else:   # stride 2: taps 1+2 from in-row phases, tap 0 from row j-1
            acc = (jnp.dot(xv, w_ref[0], preferred_element_type=jnp.float32)
                   + jnp.dot(pad_ref[pl.ds(PAD0 - 1, Lo), :], w_ref[1],
                             preferred_element_type=jnp.float32))

        y_ref[...] = acc[None].astype(y_ref.dtype)             # bf16 store
        st_ref[0:1, 0:1, :] = jnp.sum(acc, axis=0, keepdims=True)[None]
        st_ref[0:1, 1:2, :] = jnp.sum(acc * acc, axis=0, keepdims=True)[None]

    in_specs = [pl.BlockSpec((1, Lw, Cw), lambda i: (i, 0, 0)),
                pl.BlockSpec(w_lhs.shape, lambda i: (0, 0, 0))]      # resident
    operands = [x_in, w_lhs.astype(jnp.float32)]
    if fuse_in:
        in_specs += [pl.BlockSpec((1, Cw), lambda i: (0, 0)),        # resident
                     pl.BlockSpec((1, Cw), lambda i: (0, 0))]
        operands += [in_scale.reshape(1, Cw).astype(jnp.float32),
                     in_shift.reshape(1, Cw).astype(jnp.float32)]

    y, stats = pl.pallas_call(
        kernel,
        out_shape=(jax.ShapeDtypeStruct((N, Lo, Cout), y_dtype),
                   jax.ShapeDtypeStruct((N, 2, Cout), jnp.float32)),
        grid=(N,),
        in_specs=in_specs,
        out_specs=(pl.BlockSpec((1, Lo, Cout), lambda i: (i, 0, 0)),
                   pl.BlockSpec((1, 2, Cout), lambda i: (i, 0, 0))),
        scratch_shapes=[pltpu.VMEM((rows, Cw), jnp.float32)],
        compiler_params=_cparams(),
    )(*operands)
    return y, stats


def bn_scale_shift(stats, count, gamma, beta, eps=EPS):
    """Fold training-mode BN stats into per-channel scale/shift (tiny, XLA)."""
    ssum = jnp.sum(stats[:, 0, :], axis=0)
    ssq = jnp.sum(stats[:, 1, :], axis=0)
    mean = ssum / count
    # TODO(synk): use a shifted/Welford reduction for very large N*L batches.
    var = jnp.maximum(ssq / count - mean * mean, 0.0)
    scale = gamma * jax.lax.rsqrt(var + eps)
    shift = beta - mean * scale
    return scale, shift


# ---------------------------------------------------------------------------
# K3: BN2-apply + shortcut + ReLU (shortcut built in-kernel)
# ---------------------------------------------------------------------------
def bn_shortcut_relu(y, scale, shift, sc_src, proj=None, out_dtype=jnp.float32):
    """out = relu(y * scale + shift + shortcut).

    proj is None   -> identity shortcut: sc_src (N, Lo, P) added directly.
    proj (Csc, P)  -> option 'A': sc_src is the phase-packed input; the matmul
                      with the 0/1 projection does the ::2 pick + channel pad.
    """
    N, Lo, P = y.shape
    Csc = sc_src.shape[-1]
    has_proj = proj is not None

    def kernel(*refs):
        if has_proj:
            y_ref, s_ref, b_ref, x_ref, p_ref, o_ref = refs
            sc = jnp.dot(x_ref[0].astype(jnp.float32), p_ref[...],
                         preferred_element_type=jnp.float32)
        else:
            y_ref, s_ref, b_ref, x_ref, o_ref = refs
            sc = x_ref[0].astype(jnp.float32)
        out = jnp.maximum(
            y_ref[0].astype(jnp.float32) * s_ref[...] + b_ref[...] + sc, 0.0)
        o_ref[...] = out[None].astype(o_ref.dtype)

    in_specs = [pl.BlockSpec((1, Lo, P), lambda i: (i, 0, 0)),
                pl.BlockSpec((1, P), lambda i: (0, 0)),
                pl.BlockSpec((1, P), lambda i: (0, 0)),
                pl.BlockSpec((1, Lo, Csc), lambda i: (i, 0, 0))]
    operands = [y, scale.reshape(1, P).astype(jnp.float32),
                shift.reshape(1, P).astype(jnp.float32), sc_src]
    if has_proj:
        in_specs.append(pl.BlockSpec((Csc, P), lambda i: (0, 0)))    # resident
        operands.append(proj.astype(jnp.float32))

    return pl.pallas_call(
        kernel,
        out_shape=jax.ShapeDtypeStruct((N, Lo, P), out_dtype),
        grid=(N,),
        in_specs=in_specs,
        out_specs=pl.BlockSpec((1, Lo, P), lambda i: (i, 0, 0)),
        compiler_params=_cparams(),
    )(*operands)


# ---------------------------------------------------------------------------
# BasicBlock_1d forward
# ---------------------------------------------------------------------------
def basic_block_1d_forward(x_ncl, params, stride):
    """BasicBlock_1d forward (training-mode BN). x_ncl: (N, Cin, L) float."""
    N, Cin, L = x_ncl.shape
    planes = params["g1"].shape[0]
    x_nlc = jnp.transpose(x_ncl.astype(jnp.float32), (0, 2, 1))    # (N, L, Cin)

    # conv1 + BN1 partial stats (y1 stored bf16; stats from the f32 accumulator)
    y1, st1 = conv3_bn_stats(x_nlc, params["w1l"], stride)
    Lo = y1.shape[1]
    s1, b1 = bn_scale_shift(st1, N * Lo, params["g1"], params["b1"])

    # BN1-apply + ReLU fused into conv2's input path + BN2 partial stats
    y2, st2 = conv3_bn_stats(y1, params["w2l"], 1, in_scale=s1, in_shift=b1)
    s2, b2 = bn_scale_shift(st2, N * Lo, params["g2"], params["b2"])

    # BN2-apply + shortcut + ReLU, fully fused
    if stride != 1 or Cin != planes:
        # option 'A': F.pad(x[:, :, ::2], (0, 0, planes//4, planes//4))
        assert stride == 2, "option-A shortcut only defined for stride 2 here"
        pad_c = planes // 4
        assert Cin + 2 * pad_c == planes
        proj = jnp.pad(jnp.eye(Cin, dtype=jnp.float32),
                       ((0, Cin), (pad_c, planes - pad_c - Cin)))   # (2Cin, P)
        sc_src = x_nlc.reshape(N, Lo, 2 * Cin)                      # free reshape
        out_nlc = bn_shortcut_relu(y2, s2, b2, sc_src, proj)
    else:
        out_nlc = bn_shortcut_relu(y2, s2, b2, x_nlc, None)

    return jnp.transpose(out_nlc, (0, 2, 1))                        # (N, C, Lo)


# ---------------------------------------------------------------------------
# Pure-JAX reference (f32) for the correctness check
# ---------------------------------------------------------------------------
def reference_forward(x, params, stride):
    def conv1d(a, w, s):
        return jax.lax.conv_general_dilated(
            a, w, (s,), ((1, 1),),
            dimension_numbers=("NCH", "OIH", "NCH"),
            precision=jax.lax.Precision.HIGHEST)

    def bn(y, g, b):
        mean = jnp.mean(y, axis=(0, 2), keepdims=True)
        var = jnp.mean((y - mean) ** 2, axis=(0, 2), keepdims=True)
        yh = (y - mean) * jax.lax.rsqrt(var + EPS)
        return yh * g[None, :, None] + b[None, :, None]

    planes = params["g1"].shape[0]
    out = jax.nn.relu(bn(conv1d(x, params["w1"], stride),
                         params["g1"], params["b1"]))
    out = bn(conv1d(out, params["w2"], 1), params["g2"], params["b2"])
    if stride != 1 or x.shape[1] != planes:
        pad_c = planes // 4
        sc = jnp.pad(x[:, :, ::2], ((0, 0), (pad_c, pad_c), (0, 0)))
    else:
        sc = x
    return jax.nn.relu(out + sc)


# ---------------------------------------------------------------------------
if __name__ == "__main__":
    def run_case(in_planes, planes, stride, N, L, key):
        k = jax.random.split(key, 7)
        x = jax.random.normal(k[0], (N, in_planes, L), jnp.float32)
        w1 = jax.random.normal(k[1], (planes, in_planes, 3), jnp.float32) * 0.1
        w2 = jax.random.normal(k[2], (planes, planes, 3), jnp.float32) * 0.1
        g1 = 1.0 + 0.1 * jax.random.normal(k[3], (planes,), jnp.float32)
        b1 = 0.1 * jax.random.normal(k[4], (planes,), jnp.float32)
        g2 = 1.0 + 0.1 * jax.random.normal(k[5], (planes,), jnp.float32)
        b2 = 0.1 * jax.random.normal(k[6], (planes,), jnp.float32)

        params = prepare_params(w1, w2, g1, b1, g2, b2, stride)
        fwd = jax.jit(functools.partial(basic_block_1d_forward, stride=stride))
        out = jax.block_until_ready(fwd(x, params))

        ref = reference_forward(x, params, stride)
        Lo = (L - 1) // stride + 1
        assert out.shape == ref.shape == (N, planes, Lo), out.shape
        max_err = float(jnp.max(jnp.abs(out - ref)))
        # bf16 intermediate storage (f32 matmul/BN math) -> loose tolerance.
        assert jnp.allclose(out, ref, rtol=5e-2, atol=5e-2), max_err
        return max_err

    key = jax.random.PRNGKey(0)
    key_a, key_b = jax.random.split(key)
    # BasicBlock_1d(4, 8, stride=2, option='A')  -> projection shortcut
    run_case(4, 8, 2, 2, 16, key_a)
    # BasicBlock_1d(8, 8, stride=1)              -> identity shortcut
    run_case(8, 8, 1, 2, 16, key_b)

    print("KERNEL_OK")
</pallas_src>

<mosaic_0001>
module attributes {stable_mosaic.version = 11 : i64} {
  func.func @kernel(%arg0: i32, %arg1: memref<1x8x8xf32, #tpu.memory_space<vmem>>, %arg2: memref<2x8x8xf32, #tpu.memory_space<vmem>>, %arg3: memref<1x8x8xbf16, #tpu.memory_space<vmem>>, %arg4: memref<1x2x8xf32, #tpu.memory_space<vmem>>, %arg5: memref<24x8xf32, #tpu.memory_space<vmem>>) attributes {dimension_semantics = [#tpu.dimension_semantics<parallel>], iteration_bounds = array<i64: 2>, scalar_prefetch = 0 : i64, scratch_operands = 1 : i64, tpu.core_type = #tpu.core_type<tc>, window_params = [{transform_indices = @transform_0, window_bounds = array<i64: 1, 8, 8>}, {pipeline_mode = #tpu.pipeline_mode<synchronous>, transform_indices = @transform_1, window_bounds = array<i64: 2, 8, 8>}, {transform_indices = @transform_2, window_bounds = array<i64: 1, 8, 8>}, {transform_indices = @transform_3, window_bounds = array<i64: 1, 2, 8>}]} {
    %c0 = arith.constant 0 : index
    %c0_0 = arith.constant 0 : index
    %c0_1 = arith.constant 0 : index
    %0 = vector.load %arg1[%c0, %c0_0, %c0_1] : memref<1x8x8xf32, #tpu.memory_space<vmem>>, vector<1x8x8xf32>
    %1 = vector.shape_cast %0 : vector<1x8x8xf32> to vector<8x8xf32>
    %cst = arith.constant 0.000000e+00 : f32
    %2 = vector.broadcast %cst : f32 to vector<24x8xf32>
    %c0_2 = arith.constant 0 : index
    %c0_3 = arith.constant 0 : index
    %3 = vector.load %arg5[%c0_2, %c0_3] : memref<24x8xf32, #tpu.memory_space<vmem>>, vector<24x8xf32>
    tpu.vector_store %arg5[%c0_2, %c0_3], %2 {strides = array<i32>} : memref<24x8xf32, #tpu.memory_space<vmem>>, vector<24x8xf32>,
    %c8 = arith.constant 8 : index
    %c0_4 = arith.constant 0 : index
    %4 = vector.load %arg5[%c8, %c0_4] : memref<24x8xf32, #tpu.memory_space<vmem>>, vector<8x8xf32>
    tpu.vector_store %arg5[%c8, %c0_4], %1 {strides = array<i32>} : memref<24x8xf32, #tpu.memory_space<vmem>>, vector<8x8xf32>,
    %c0_5 = arith.constant 0 : index
    %c0_6 = arith.constant 0 : index
    %c0_7 = arith.constant 0 : index
    %5 = vector.load %arg2[%c0_5, %c0_6, %c0_7] : memref<2x8x8xf32, #tpu.memory_space<vmem>>, vector<1x8x8xf32>
    %6 = vector.shape_cast %5 : vector<1x8x8xf32> to vector<8x8xf32>
    %cst_8 = arith.constant dense<0.000000e+00> : vector<8x8xf32>
    %7 = tpu.matmul %1, %6, %cst_8 {dimension_numbers = #tpu.dot_dimension_numbers<[1], [0], [0], [1], [0, 0, 1, 1], [], []>} : vector<8x8xf32>, vector<8x8xf32>, vector<8x8xf32> -> vector<8x8xf32>
    %c7 = arith.constant 7 : index
    %c0_9 = arith.constant 0 : index
    %8 = vector.load %arg5[%c7, %c0_9] : memref<24x8xf32, #tpu.memory_space<vmem>>, vector<8x8xf32>
    %c1 = arith.constant 1 : index
    %c0_10 = arith.constant 0 : index
    %c0_11 = arith.constant 0 : index
    %9 = vector.load %arg2[%c1, %c0_10, %c0_11] : memref<2x8x8xf32, #tpu.memory_space<vmem>>, vector<1x8x8xf32>
    %10 = vector.shape_cast %9 : vector<1x8x8xf32> to vector<8x8xf32>
    %cst_12 = arith.constant dense<0.000000e+00> : vector<8x8xf32>
    %11 = tpu.matmul %8, %10, %cst_12 {dimension_numbers = #tpu.dot_dimension_numbers<[1], [0], [0], [1], [0, 0, 1, 1], [], []>} : vector<8x8xf32>, vector<8x8xf32>, vector<8x8xf32> -> vector<8x8xf32>
    %12 = arith.addf %7, %11 : vector<8x8xf32>
    %13 = vector.shape_cast %12 : vector<8x8xf32> to vector<1x8x8xf32>
    %14 = arith.truncf %13 : vector<1x8x8xf32> to vector<1x8x8xbf16>
    %c0_13 = arith.constant 0 : index
    %c0_14 = arith.constant 0 : index
    %c0_15 = arith.constant 0 : index
    %15 = vector.load %arg3[%c0_13, %c0_14, %c0_15] : memref<1x8x8xbf16, #tpu.memory_space<vmem>>, vector<1x8x8xbf16>
    tpu.vector_store %arg3[%c0_13, %c0_14, %c0_15], %14 {strides = array<i32>} : memref<1x8x8xbf16, #tpu.memory_space<vmem>>, vector<1x8x8xbf16>,
    %cst_16 = arith.constant dense<0.000000e+00> : vector<8xf32>
    %16 = vector.multi_reduction <add>, %12, %cst_16 [0] : vector<8x8xf32> to vector<8xf32>
    %17 = vector.shape_cast %16 : vector<8xf32> to vector<1x8xf32>
    %18 = vector.shape_cast %17 : vector<1x8xf32> to vector<1x1x8xf32>
    %c0_17 = arith.constant 0 : index
    %c0_18 = arith.constant 0 : index
    %c0_19 = arith.constant 0 : index
    %19 = vector.load %arg4[%c0_17, %c0_18, %c0_19] : memref<1x2x8xf32, #tpu.memory_space<vmem>>, vector<1x1x8xf32>
    tpu.vector_store %arg4[%c0_17, %c0_18, %c0_19], %18 {strides = array<i32>} : memref<1x2x8xf32, #tpu.memory_space<vmem>>, vector<1x1x8xf32>,
    %20 = arith.mulf %12, %12 : vector<8x8xf32>
    %cst_20 = arith.constant dense<0.000000e+00> : vector<8xf32>
    %21 = vector.multi_reduction <add>, %20, %cst_20 [0] : vector<8x8xf32> to vector<8xf32>
    %22 = vector.shape_cast %21 : vector<8xf32> to vector<1x8xf32>
    %23 = vector.shape_cast %22 : vector<1x8xf32> to vector<1x1x8xf32>
    %c0_21 = arith.constant 0 : index
    %c1_22 = arith.constant 1 : index
    %c0_23 = arith.constant 0 : index
    %24 = vector.load %arg4[%c0_21, %c1_22, %c0_23] : memref<1x2x8xf32, #tpu.memory_space<vmem>>, vector<1x1x8xf32>
    tpu.vector_store %arg4[%c0_21, %c1_22, %c0_23], %23 {strides = array<i32>} : memref<1x2x8xf32, #tpu.memory_space<vmem>>, vector<1x1x8xf32>,
    return
  }
  func.func @transform_0(%arg0: i32) -> (i32, i32, i32) {
    %c0_i32 = arith.constant 0 : i32
    %c0_i32_0 = arith.constant 0 : i32
    %c0_i32_1 = arith.constant 0 : i32
    return %arg0, %c0_i32, %c0_i32_0 : i32, i32, i32
  }
  func.func @transform_1(%arg0: i32) -> (i32, i32, i32) {
    %c0_i32 = arith.constant 0 : i32
    %c0_i32_0 = arith.constant 0 : i32
    %c0_i32_1 = arith.constant 0 : i32
    %c0_i32_2 = arith.constant 0 : i32
    return %c0_i32, %c0_i32_0, %c0_i32_1 : i32, i32, i32
  }
  func.func @transform_2(%arg0: i32) -> (i32, i32, i32) {
    %c0_i32 = arith.constant 0 : i32
    %c0_i32_0 = arith.constant 0 : i32
    %c0_i32_1 = arith.constant 0 : i32
    return %arg0, %c0_i32, %c0_i32_0 : i32, i32, i32
  }
  func.func @transform_3(%arg0: i32) -> (i32, i32, i32) {
    %c0_i32 = arith.constant 0 : i32
    %c0_i32_0 = arith.constant 0 : i32
    %c0_i32_1 = arith.constant 0 : i32
    return %arg0, %c0_i32, %c0_i32_0 : i32, i32, i32
  }
}

module attributes {stable_mosaic.version = 11 : i64} {
  func.func @kernel(%arg0: i32, %arg1: memref<1x8x8xbf16, #tpu.memory_space<vmem>>, %arg2: memref<3x8x8xf32, #tpu.memory_space<vmem>>, %arg3: memref<1x8xf32, #tpu.memory_space<vmem>>, %arg4: memref<1x8xf32, #tpu.memory_space<vmem>>, %arg5: memref<1x8x8xbf16, #tpu.memory_space<vmem>>, %arg6: memref<1x2x8xf32, #tpu.memory_space<vmem>>, %arg7: memref<24x8xf32, #tpu.memory_space<vmem>>) attributes {dimension_semantics = [#tpu.dimension_semantics<parallel>], iteration_bounds = array<i64: 2>, scalar_prefetch = 0 : i64, scratch_operands = 1 : i64, tpu.core_type = #tpu.core_type<tc>, window_params = [{transform_indices = @transform_0, window_bounds = array<i64: 1, 8, 8>}, {pipeline_mode = #tpu.pipeline_mode<synchronous>, transform_indices = @transform_1, window_bounds = array<i64: 3, 8, 8>}, {pipeline_mode = #tpu.pipeline_mode<synchronous>, transform_indices = @transform_2, window_bounds = array<i64: 1, 8>}, {pipeline_mode = #tpu.pipeline_mode<synchronous>, transform_indices = @transform_3, window_bounds = array<i64: 1, 8>}, {transform_indices = @transform_4, window_bounds = array<i64: 1, 8, 8>}, {transform_indices = @transform_5, window_bounds = array<i64: 1, 2, 8>}]} {
    %c0 = arith.constant 0 : index
    %c0_0 = arith.constant 0 : index
    %c0_1 = arith.constant 0 : index
    %0 = vector.load %arg1[%c0, %c0_0, %c0_1] : memref<1x8x8xbf16, #tpu.memory_space<vmem>>, vector<1x8x8xbf16>
    %1 = vector.shape_cast %0 : vector<1x8x8xbf16> to vector<8x8xbf16>
    %2 = arith.extf %1 : vector<8x8xbf16> to vector<8x8xf32>
    %c0_2 = arith.constant 0 : index
    %c0_3 = arith.constant 0 : index
    %3 = vector.load %arg3[%c0_2, %c0_3] : memref<1x8xf32, #tpu.memory_space<vmem>>, vector<1x8xf32>
    %4 = vector.broadcast %3 : vector<1x8xf32> to vector<8x8xf32>
    %5 = arith.mulf %2, %4 : vector<8x8xf32>
    %c0_4 = arith.constant 0 : index
    %c0_5 = arith.constant 0 : index
    %6 = vector.load %arg4[%c0_4, %c0_5] : memref<1x8xf32, #tpu.memory_space<vmem>>, vector<1x8xf32>
    %7 = vector.broadcast %6 : vector<1x8xf32> to vector<8x8xf32>
    %8 = arith.addf %5, %7 : vector<8x8xf32>
    %cst = arith.constant 0.000000e+00 : f32
    %9 = vector.broadcast %cst : f32 to vector<8x8xf32>
    %10 = arith.maximumf %8, %9 : vector<8x8xf32>
    %cst_6 = arith.constant 0.000000e+00 : f32
    %11 = vector.broadcast %cst_6 : f32 to vector<24x8xf32>
    %c0_7 = arith.constant 0 : index
    %c0_8 = arith.constant 0 : index
    %12 = vector.load %arg7[%c0_7, %c0_8] : memref<24x8xf32, #tpu.memory_space<vmem>>, vector<24x8xf32>
    tpu.vector_store %arg7[%c0_7, %c0_8], %11 {strides = array<i32>} : memref<24x8xf32, #tpu.memory_space<vmem>>, vector<24x8xf32>,
    %c8 = arith.constant 8 : index
    %c0_9 = arith.constant 0 : index
    %13 = vector.load %arg7[%c8, %c0_9] : memref<24x8xf32, #tpu.memory_space<vmem>>, vector<8x8xf32>
    tpu.vector_store %arg7[%c8, %c0_9], %10 {strides = array<i32>} : memref<24x8xf32, #tpu.memory_space<vmem>>, vector<8x8xf32>,
    %c7 = arith.constant 7 : index
    %c0_10 = arith.constant 0 : index
    %14 = vector.load %arg7[%c7, %c0_10] : memref<24x8xf32, #tpu.memory_space<vmem>>, vector<8x8xf32>
    %c0_11 = arith.constant 0 : index
    %c0_12 = arith.constant 0 : index
    %c0_13 = arith.constant 0 : index
    %15 = vector.load %arg2[%c0_11, %c0_12, %c0_13] : memref<3x8x8xf32, #tpu.memory_space<vmem>>, vector<1x8x8xf32>
    %16 = vector.shape_cast %15 : vector<1x8x8xf32> to vector<8x8xf32>
    %cst_14 = arith.constant dense<0.000000e+00> : vector<8x8xf32>
    %17 = tpu.matmul %14, %16, %cst_14 {dimension_numbers = #tpu.dot_dimension_numbers<[1], [0], [0], [1], [0, 0, 1, 1], [], []>} : vector<8x8xf32>, vector<8x8xf32>, vector<8x8xf32> -> vector<8x8xf32>
    %c1 = arith.constant 1 : index
    %c0_15 = arith.constant 0 : index
    %c0_16 = arith.constant 0 : index
    %18 = vector.load %arg2[%c1, %c0_15, %c0_16] : memref<3x8x8xf32, #tpu.memory_space<vmem>>, vector<1x8x8xf32>
    %19 = vector.shape_cast %18 : vector<1x8x8xf32> to vector<8x8xf32>
    %cst_17 = arith.constant dense<0.000000e+00> : vector<8x8xf32>
    %20 = tpu.matmul %10, %19, %cst_17 {dimension_numbers = #tpu.dot_dimension_numbers<[1], [0], [0], [1], [0, 0, 1, 1], [], []>} : vector<8x8xf32>, vector<8x8xf32>, vector<8x8xf32> -> vector<8x8xf32>
    %21 = arith.addf %17, %20 : vector<8x8xf32>
    %c9 = arith.constant 9 : index
    %c0_18 = arith.constant 0 : index
    %22 = vector.load %arg7[%c9, %c0_18] : memref<24x8xf32, #tpu.memory_space<vmem>>, vector<8x8xf32>
    %c2 = arith.constant 2 : index
    %c0_19 = arith.constant 0 : index
    %c0_20 = arith.constant 0 : index
    %23 = vector.load %arg2[%c2, %c0_19, %c0_20] : memref<3x8x8xf32, #tpu.memory_space<vmem>>, vector<1x8x8xf32>
    %24 = vector.shape_cast %23 : vector<1x8x8xf32> to vector<8x8xf32>
    %cst_21 = arith.constant dense<0.000000e+00> : vector<8x8xf32>
    %25 = tpu.matmul %22, %24, %cst_21 {dimension_numbers = #tpu.dot_dimension_numbers<[1], [0], [0], [1], [0, 0, 1, 1], [], []>} : vector<8x8xf32>, vector<8x8xf32>, vector<8x8xf32> -> vector<8x8xf32>
    %26 = arith.addf %21, %25 : vector<8x8xf32>
    %27 = vector.shape_cast %26 : vector<8x8xf32> to vector<1x8x8xf32>
    %28 = arith.truncf %27 : vector<1x8x8xf32> to vector<1x8x8xbf16>
    %c0_22 = arith.constant 0 : index
    %c0_23 = arith.constant 0 : index
    %c0_24 = arith.constant 0 : index
    %29 = vector.load %arg5[%c0_22, %c0_23, %c0_24] : memref<1x8x8xbf16, #tpu.memory_space<vmem>>, vector<1x8x8xbf16>
    tpu.vector_store %arg5[%c0_22, %c0_23, %c0_24], %28 {strides = array<i32>} : memref<1x8x8xbf16, #tpu.memory_space<vmem>>, vector<1x8x8xbf16>,
    %cst_25 = arith.constant dense<0.000000e+00> : vector<8xf32>
    %30 = vector.multi_reduction <add>, %26, %cst_25 [0] : vector<8x8xf32> to vector<8xf32>
    %31 = vector.shape_cast %30 : vector<8xf32> to vector<1x8xf32>
    %32 = vector.shape_cast %31 : vector<1x8xf32> to vector<1x1x8xf32>
    %c0_26 = arith.constant 0 : index
    %c0_27 = arith.constant 0 : index
    %c0_28 = arith.constant 0 : index
    %33 = vector.load %arg6[%c0_26, %c0_27, %c0_28] : memref<1x2x8xf32, #tpu.memory_space<vmem>>, vector<1x1x8xf32>
    tpu.vector_store %arg6[%c0_26, %c0_27, %c0_28], %32 {strides = array<i32>} : memref<1x2x8xf32, #tpu.memory_space<vmem>>, vector<1x1x8xf32>,
    %34 = arith.mulf %26, %26 : vector<8x8xf32>
    %cst_29 = arith.constant dense<0.000000e+00> : vector<8xf32>
    %35 = vector.multi_reduction <add>, %34, %cst_29 [0] : vector<8x8xf32> to vector<8xf32>
    %36 = vector.shape_cast %35 : vector<8xf32> to vector<1x8xf32>
    %37 = vector.shape_cast %36 : vector<1x8xf32> to vector<1x1x8xf32>
    %c0_30 = arith.constant 0 : index
    %c1_31 = arith.constant 1 : index
    %c0_32 = arith.constant 0 : index
    %38 = vector.load %arg6[%c0_30, %c1_31, %c0_32] : memref<1x2x8xf32, #tpu.memory_space<vmem>>, vector<1x1x8xf32>
    tpu.vector_store %arg6[%c0_30, %c1_31, %c0_32], %37 {strides = array<i32>} : memref<1x2x8xf32, #tpu.memory_space<vmem>>, vector<1x1x8xf32>,
    return
  }
  func.func @transform_0(%arg0: i32) -> (i32, i32, i32) {
    %c0_i32 = arith.constant 0 : i32
    %c0_i32_0 = arith.constant 0 : i32
    %c0_i32_1 = arith.constant 0 : i32
    return %arg0, %c0_i32, %c0_i32_0 : i32, i32, i32
  }
  func.func @transform_1(%arg0: i32) -> (i32, i32, i32) {
    %c0_i32 = arith.constant 0 : i32
    %c0_i32_0 = arith.constant 0 : i32
    %c0_i32_1 = arith.constant 0 : i32
    %c0_i32_2 = arith.constant 0 : i32
    return %c0_i32, %c0_i32_0, %c0_i32_1 : i32, i32, i32
  }
  func.func @transform_2(%arg0: i32) -> (i32, i32) {
    %c0_i32 = arith.constant 0 : i32
    %c0_i32_0 = arith.constant 0 : i32
    %c0_i32_1 = arith.constant 0 : i32
    return %c0_i32, %c0_i32_0 : i32, i32
  }
  func.func @transform_3(%arg0: i32) -> (i32, i32) {
    %c0_i32 = arith.constant 0 : i32
    %c0_i32_0 = arith.constant 0 : i32
    %c0_i32_1 = arith.constant 0 : i32
    return %c0_i32, %c0_i32_0 : i32, i32
  }
  func.func @transform_4(%arg0: i32) -> (i32, i32, i32) {
    %c0_i32 = arith.constant 0 : i32
    %c0_i32_0 = arith.constant 0 : i32
    %c0_i32_1 = arith.constant 0 : i32
    return %arg0, %c0_i32, %c0_i32_0 : i32, i32, i32
  }
  func.func @transform_5(%arg0: i32) -> (i32, i32, i32) {
    %c0_i32 = arith.constant 0 : i32
    %c0_i32_0 = arith.constant 0 : i32
    %c0_i32_1 = arith.constant 0 : i32
    return %arg0, %c0_i32, %c0_i32_0 : i32, i32, i32
  }
}

module attributes {stable_mosaic.version = 11 : i64} {
  func.func @kernel(%arg0: i32, %arg1: memref<1x8x8xbf16, #tpu.memory_space<vmem>>, %arg2: memref<1x8xf32, #tpu.memory_space<vmem>>, %arg3: memref<1x8xf32, #tpu.memory_space<vmem>>, %arg4: memref<1x8x8xf32, #tpu.memory_space<vmem>>, %arg5: memref<8x8xf32, #tpu.memory_space<vmem>>, %arg6: memref<1x8x8xf32, #tpu.memory_space<vmem>>) attributes {dimension_semantics = [#tpu.dimension_semantics<parallel>], iteration_bounds = array<i64: 2>, scalar_prefetch = 0 : i64, scratch_operands = 0 : i64, tpu.core_type = #tpu.core_type<tc>, window_params = [{transform_indices = @transform_0, window_bounds = array<i64: 1, 8, 8>}, {pipeline_mode = #tpu.pipeline_mode<synchronous>, transform_indices = @transform_1, window_bounds = array<i64: 1, 8>}, {pipeline_mode = #tpu.pipeline_mode<synchronous>, transform_indices = @transform_2, window_bounds = array<i64: 1, 8>}, {transform_indices = @transform_3, window_bounds = array<i64: 1, 8, 8>}, {pipeline_mode = #tpu.pipeline_mode<synchronous>, transform_indices = @transform_4, window_bounds = array<i64: 8, 8>}, {transform_indices = @transform_5, window_bounds = array<i64: 1, 8, 8>}]} {
    %c0 = arith.constant 0 : index
    %c0_0 = arith.constant 0 : index
    %c0_1 = arith.constant 0 : index
    %0 = vector.load %arg4[%c0, %c0_0, %c0_1] : memref<1x8x8xf32, #tpu.memory_space<vmem>>, vector<1x8x8xf32>
    %1 = vector.shape_cast %0 : vector<1x8x8xf32> to vector<8x8xf32>
    %c0_2 = arith.constant 0 : index
    %c0_3 = arith.constant 0 : index
    %2 = vector.load %arg5[%c0_2, %c0_3] : memref<8x8xf32, #tpu.memory_space<vmem>>, vector<8x8xf32>
    %cst = arith.constant dense<0.000000e+00> : vector<8x8xf32>
    %3 = tpu.matmul %1, %2, %cst {dimension_numbers = #tpu.dot_dimension_numbers<[1], [0], [0], [1], [0, 0, 1, 1], [], []>} : vector<8x8xf32>, vector<8x8xf32>, vector<8x8xf32> -> vector<8x8xf32>
    %c0_4 = arith.constant 0 : index
    %c0_5 = arith.constant 0 : index
    %c0_6 = arith.constant 0 : index
    %4 = vector.load %arg1[%c0_4, %c0_5, %c0_6] : memref<1x8x8xbf16, #tpu.memory_space<vmem>>, vector<1x8x8xbf16>
    %5 = vector.shape_cast %4 : vector<1x8x8xbf16> to vector<8x8xbf16>
    %6 = arith.extf %5 : vector<8x8xbf16> to vector<8x8xf32>
    %c0_7 = arith.constant 0 : index
    %c0_8 = arith.constant 0 : index
    %7 = vector.load %arg2[%c0_7, %c0_8] : memref<1x8xf32, #tpu.memory_space<vmem>>, vector<1x8xf32>
    %8 = vector.broadcast %7 : vector<1x8xf32> to vector<8x8xf32>
    %9 = arith.mulf %6, %8 : vector<8x8xf32>
    %c0_9 = arith.constant 0 : index
    %c0_10 = arith.constant 0 : index
    %10 = vector.load %arg3[%c0_9, %c0_10] : memref<1x8xf32, #tpu.memory_space<vmem>>, vector<1x8xf32>
    %11 = vector.broadcast %10 : vector<1x8xf32> to vector<8x8xf32>
    %12 = arith.addf %9, %11 : vector<8x8xf32>
    %13 = arith.addf %12, %3 : vector<8x8xf32>
    %cst_11 = arith.constant 0.000000e+00 : f32
    %14 = vector.broadcast %cst_11 : f32 to vector<8x8xf32>
    %15 = arith.maximumf %13, %14 : vector<8x8xf32>
    %16 = vector.shape_cast %15 : vector<8x8xf32> to vector<1x8x8xf32>
    %c0_12 = arith.constant 0 : index
    %c0_13 = arith.constant 0 : index
    %c0_14 = arith.constant 0 : index
    %17 = vector.load %arg6[%c0_12, %c0_13, %c0_14] : memref<1x8x8xf32, #tpu.memory_space<vmem>>, vector<1x8x8xf32>
    tpu.vector_store %arg6[%c0_12, %c0_13, %c0_14], %16 {strides = array<i32>} : memref<1x8x8xf32, #tpu.memory_space<vmem>>, vector<1x8x8xf32>,
    return
  }
  func.func @transform_0(%arg0: i32) -> (i32, i32, i32) {
    %c0_i32 = arith.constant 0 : i32
    %c0_i32_0 = arith.constant 0 : i32
    %c0_i32_1 = arith.constant 0 : i32
    return %arg0, %c0_i32, %c0_i32_0 : i32, i32, i32
  }
  func.func @transform_1(%arg0: i32) -> (i32, i32) {
    %c0_i32 = arith.constant 0 : i32
    %c0_i32_0 = arith.constant 0 : i32
    %c0_i32_1 = arith.constant 0 : i32
    return %c0_i32, %c0_i32_0 : i32, i32
  }
  func.func @transform_2(%arg0: i32) -> (i32, i32) {
    %c0_i32 = arith.constant 0 : i32
    %c0_i32_0 = arith.constant 0 : i32
    %c0_i32_1 = arith.constant 0 : i32
    return %c0_i32, %c0_i32_0 : i32, i32
  }
  func.func @transform_3(%arg0: i32) -> (i32, i32, i32) {
    %c0_i32 = arith.constant 0 : i32
    %c0_i32_0 = arith.constant 0 : i32
    %c0_i32_1 = arith.constant 0 : i32
    return %arg0, %c0_i32, %c0_i32_0 : i32, i32, i32
  }
  func.func @transform_4(%arg0: i32) -> (i32, i32) {
    %c0_i32 = arith.constant 0 : i32
    %c0_i32_0 = arith.constant 0 : i32
    %c0_i32_1 = arith.constant 0 : i32
    return %c0_i32, %c0_i32_0 : i32, i32
  }
  func.func @transform_5(%arg0: i32) -> (i32, i32, i32) {
    %c0_i32 = arith.constant 0 : i32
    %c0_i32_0 = arith.constant 0 : i32
    %c0_i32_1 = arith.constant 0 : i32
    return %arg0, %c0_i32, %c0_i32_0 : i32, i32, i32
  }
}

</mosaic_0001>

<llo_original>
// kernel: basic_block_1d_forward.3
$region0: #{basic_block_1d_forward.3}
  #allocation0 [shape = 'u32[]', space=smem, size = 0x4, offset = 0x4, fixed_abs, tag = 'smem constant byte address 0x4 - core index']
  #allocation1 [shape = 'u32[144,128]{1,0:T(1,128)}', space=vmem, size = 0x12000, scoped, tag = 'internal scratch']
  #allocation2 [shape = 'f32[24,8]{1,0:T(8,128)}', space=vmem, size = 0x3000, scoped, tag = 'scratch operand']
  %s0 = inlined_call_operand.vmem [shape: f32[2,8,8], index: 0, kind: input, shape index: {}]
  %s1 = inlined_call_operand.vmem [shape: f32[2,8,8], index: 1, kind: input, shape index: {}]
  %s2 = inlined_call_operand.vmem [shape: bf16[2,8,8], index: 2, kind: output, shape index: {0}]
  %s3 = inlined_call_operand.vmem [shape: f32[2,2,8], index: 3, kind: output, shape index: {1}]
  %4 = xla_tuple %s2, %s3
  %s5 = sld [smem:[#allocation0]]
  $region49: #{basic_block_1d_forward.3} parent=0
    _
  %s7 = ssub.s32 1, %s5
  %s8 = scalar_select 0, %s7, %s5
  loop: start=0, step=1, limit=4
  $region2: #{basic_block_1d_forward.3} parent=0 // loop_pre_header
    _
  $region3: #{basic_block_1d_forward.3} parent=0 // loop_header
    %s10 = sphi 0, %s14
    %p11 = scmp.ge.s32.totalorder %s10, 4
    %s20 = sphi 0, %s22
    %s23 = sphi 0, %s20
    %s24 = sphi 0, %s23
    %s40 = sphi 0, %s24
    %s44 = sphi 0, %s44
    %s46 = sphi 0, %s44
    %s47 = sphi 0, %s46
    %s61 = sphi 0, %s47
    %s67 = sphi 0, %s69
    %s70 = sphi 0, %s67
    %s71 = sphi 0, %s70
    %s87 = sphi 0, %s71
    %s93 = sphi 0, %s95
    %s96 = sphi 0, %s93
    %s97 = sphi 0, %s96
    %s113 = sphi 0, %s97
  $region4: #{basic_block_1d_forward.3} parent=0 // loop_header_branch
    %13 = sbr.rel (%p11) target = $region8
  $region5: #{basic_block_1d_forward.3} parent=0 // loop_body
    %s15 = ssub.s32 %s10, 1
    %s16 = ssub.s32 %s10, 2
    %s17 = sadd.s32 %s10, 1
    %s18 = ssub.s32 %s10, %s17
    %p19 = scmp.eq.s32.totalorder %s18, 0
    %s21 = sadd.s32 %s20, 1
    %s22 = scalar_select %p19, %s20, %s21
    %p25 = pneg %p19
    %p26 = scmp.eq.s32.totalorder %s10, 1
    %p27 = por %p25, %p26
    %p28 = scmp.ne.s32.totalorder %s20, %s23
    %p29 = scmp.eq.s32.totalorder %s10, 0
    %p30 = por %p28, %p29
    %p31 = scmp.ne.s32.totalorder %s20, %s23
    %p32 = scmp.eq.s32.totalorder %s15, 1
    %p33 = por %p31, %p32
    %p34 = scmp.ne.s32.totalorder %s23, %s24
    %p35 = scmp.eq.s32.totalorder %s15, 0
    %p36 = por %p34, %p35
    %p37 = scmp.ne.s32.totalorder %s23, %s24
    %p38 = scmp.eq.s32.totalorder %s16, 1
    %p39 = por %p37, %p38
    %p41 = scmp.ne.s32.totalorder %s24, %s40
    %p42 = scmp.eq.s32.totalorder %s16, 0
    %p43 = por %p41, %p42
    %s45 = sadd.s32 %s44, 1
    %p48 = scmp.eq.s32.totalorder %s10, 1
    %p49 = scmp.ne.s32.totalorder %s44, %s46
    %p50 = scmp.eq.s32.totalorder %s10, 0
    %p51 = por %p49, %p50
    %p52 = scmp.ne.s32.totalorder %s44, %s46
    %p53 = scmp.eq.s32.totalorder %s15, 1
    %p54 = por %p52, %p53
    %p55 = scmp.ne.s32.totalorder %s46, %s47
    %p56 = scmp.eq.s32.totalorder %s15, 0
    %p57 = por %p55, %p56
    %p58 = scmp.ne.s32.totalorder %s46, %s47
    %p59 = scmp.eq.s32.totalorder %s16, 1
    %p60 = por %p58, %p59
    %p62 = scmp.ne.s32.totalorder %s47, %s61
    %p63 = scmp.eq.s32.totalorder %s16, 0
    %p64 = por %p62, %p63
    %s65 = ssub.s32 %s10, %s17
    %p66 = scmp.eq.s32.totalorder %s65, 0
    %s68 = sadd.s32 %s67, 1
    %s69 = scalar_select %p66, %s67, %s68
    %p72 = pneg %p66
    %p73 = scmp.eq.s32.totalorder %s10, 1
    %p74 = por %p72, %p73
    %p75 = scmp.ne.s32.totalorder %s67, %s70
    %p76 = scmp.eq.s32.totalorder %s10, 0
    %p77 = por %p75, %p76
    %p78 = scmp.ne.s32.totalorder %s67, %s70
    %p79 = scmp.eq.s32.totalorder %s15, 1
    %p80 = por %p78, %p79
    %p81 = scmp.ne.s32.totalorder %s70, %s71
    %p82 = scmp.eq.s32.totalorder %s15, 0
    %p83 = por %p81, %p82
    %p84 = scmp.ne.s32.totalorder %s70, %s71
    %p85 = scmp.eq.s32.totalorder %s16, 1
    %p86 = por %p84, %p85
    %p88 = scmp.ne.s32.totalorder %s71, %s87
    %p89 = scmp.eq.s32.totalorder %s16, 0
    %p90 = por %p88, %p89
    %s91 = ssub.s32 %s10, %s17
    %p92 = scmp.eq.s32.totalorder %s91, 0
    %s94 = sadd.s32 %s93, 1
    %s95 = scalar_select %p92, %s93, %s94
    %p98 = pneg %p92
    %p99 = scmp.eq.s32.totalorder %s10, 1
    %p100 = por %p98, %p99
    %p101 = scmp.ne.s32.totalorder %s93, %s96
    %p102 = scmp.eq.s32.totalorder %s10, 0
    %p103 = por %p101, %p102
    %p104 = scmp.ne.s32.totalorder %s93, %s96
    %p105 = scmp.eq.s32.totalorder %s15, 1
    %p106 = por %p104, %p105
    %p107 = scmp.ne.s32.totalorder %s96, %s97
    %p108 = scmp.eq.s32.totalorder %s15, 0
    %p109 = por %p107, %p108
    %p110 = scmp.ne.s32.totalorder %s96, %s97
    %p111 = scmp.eq.s32.totalorder %s16, 1
    %p112 = por %p110, %p111
    %p114 = scmp.ne.s32.totalorder %s97, %s113
    %p115 = scmp.eq.s32.totalorder %s16, 0
    %p116 = por %p114, %p115
    %p117 = scmp.le.s32.totalorder 1, %s10
    %p118 = scmp.lt.s32.totalorder %s10, 3
    %p119 = pnand %p117, %p118
    %p120 = pneg %p119
    // Predicated region
    $region9: #{basic_block_1d_forward.3} parent=5 // pred_check
      _
    $region10: #{basic_block_1d_forward.3} parent=5 // pred_check_branch
      %122 = sbr.rel (%p119) target = $region12
    $region11: #{basic_block_1d_forward.3} parent=5 // pred_region
      %s123 = ssub.s32 %s10, 1
      // Predicated region
      $region13: #{basic_block_1d_forward.3} parent=11 // pred_check
        %p124 = pneg %p57
      $region14: #{basic_block_1d_forward.3} parent=11 // pred_check_branch
        %126 = sbr.rel (%p124) target = $region16
      $region15: #{basic_block_1d_forward.3} parent=11 // pred_region
        _
      $region16: #{basic_block_1d_forward.3} parent=11 // pred_fallthru
        _
    $region12: #{basic_block_1d_forward.3} parent=5 // pred_fallthru
      _
    %p127 = scmp.lt.s32.totalorder %s10, 2
    // Predicated region
    $region17: #{basic_block_1d_forward.3} parent=5 // pred_check
      %p128 = pneg %p127
    $region18: #{basic_block_1d_forward.3} parent=5 // pred_check_branch
      %130 = sbr.rel (%p128) target = $region20
    $region19: #{basic_block_1d_forward.3} parent=5 // pred_region
      // Predicated region
      $region21: #{basic_block_1d_forward.3} parent=19 // pred_check
        %p131 = pneg %p30
      $region22: #{basic_block_1d_forward.3} parent=19 // pred_check_branch
        %133 = sbr.rel (%p131) target = $region24
      $region23: #{basic_block_1d_forward.3} parent=19 // pred_region
        %p134 = scmp.lt.s32.totalorder %s10, 1
        %s135 = scalar_select %p134, %s10, 1
        %s136 = smul.addr %s135, 8
        %s137 = scalar_lea.vmem %s0, %s136
      $region24: #{basic_block_1d_forward.3} parent=19 // pred_fallthru
        _
    $region20: #{basic_block_1d_forward.3} parent=5 // pred_fallthru
      _
    %p138 = scmp.le.s32.totalorder 1, %s10
    %p139 = scmp.lt.s32.totalorder %s10, 3
    %p140 = pnand %p138, %p139
    %p141 = pneg %p140
    // Predicated region
    $region25: #{basic_block_1d_forward.3} parent=5 // pred_check
      _
    $region26: #{basic_block_1d_forward.3} parent=5 // pred_check_branch
      %143 = sbr.rel (%p140) target = $region28
    $region27: #{basic_block_1d_forward.3} parent=5 // pred_region
      %s144 = ssub.s32 %s10, 1
      %p145 = scmp.lt.s32.totalorder %s15, 1
      %s146 = scalar_select %p145, %s15, 1
      %s147 = smul.addr %s146, 8
      %s148 = scalar_lea.vmem %s0, %s147
      %p149 = pneg %p36
      %p150 = pneg %p33
      %p151 = pneg %p57
      %p152 = pneg %p54
      %p153 = pneg %p83
      %p154 = pneg %p80
      %p155 = scmp.lt.s32.totalorder %s15, 1
      %s156 = scalar_select %p155, %s15, 1
      %s157 = smul.addr %s156, 4
      %s158 = scalar_lea.vmem %s2, %s157
      %p159 = pneg %p109
      %p160 = pneg %p106
      %p161 = scmp.lt.s32.totalorder %s15, 1
      %s162 = scalar_select %p161, %s15, 1
      %s163 = smul.addr %s162, 2
      %s164 = scalar_lea.vmem %s3, %s163
      %p165 = scmp.lt.s32.totalorder %s15, 1
      %s166 = scalar_select %p165, %s15, 1
      %s167 = smul.addr %s166, 8
      %s168 = scalar_lea.vmem %s0, %s167
      %p169 = scmp.lt.s32.totalorder %s15, 1
      %s170 = scalar_select %p169, %s15, 1
      %s171 = smul.addr %s170, 4
      %s172 = scalar_lea.vmem %s2, %s171
      %p173 = scmp.lt.s32.totalorder %s15, 1
      %s174 = scalar_select %p173, %s15, 1
      %s175 = smul.addr %s174, 2
      %s176 = scalar_lea.vmem %s3, %s175
      %v177 = vld [vmem:[%s168] sm:$0xff]
      %vm178 = vcmask 64512
      %179 = vst.msk [vmem:[#allocation2] sm:$0xff] %vm178, 0.0
      %180 = vst.msk [vmem:[#allocation2 + $0x8] sm:$0xff] %vm178, 0.0
      %181 = vst.msk [vmem:[#allocation2 + $0x10] sm:$0xff] %vm178, 0.0
      %182 = vst.msk [vmem:[#allocation2 + $0x8] sm:$0xff] %vm178, %v177
      %v183 = vld [vmem:[%s1] sm:$0xff]
      %v184 = vld [vmem:[#allocation2 + $0x7] sm:$0xff]
      %s185 = scalar_lea.vmem %s1, 8
      %v186 = vld [vmem:[%s185] sm:$0xff]
      %v188 = vsel %vm178, %v184, 0
      %190 = vmatprep.subr.mxu0 0.0
      %191 = vmatpush1.msra.mxu0 %v186
      %192 = vmatprep.subr.mxu0 0.0
      %193 = vmatpush1.msra.mxu0 0.0
      %194 = vmatprep.subr.mxu0 0.0
      %195 = vmatpush1.msra.mxu0 0.0
      %196 = vmatprep.subr.mxu0 0.0
      %197 = vmatpush1.msra.mxu0 0.0
      %198 = vmatprep.subr.mxu0 0.0
      %199 = vmatpush1.msra.mxu0 0.0
      %200 = vmatprep.subr.mxu0 0.0
      %201 = vmatpush1.msra.mxu0 0.0
      %202 = vmatprep.subr.mxu0 0.0
      %203 = vmatpush1.msra.mxu0 0.0
      %204 = vmatprep.subr.mxu0 0.0
      %205 = vmatpush1.msra.mxu0 0.0
      %206 = vmatprep.subr.mxu0 0.0
      %207 = vmatpush1.msra.mxu0 0.0
      %208 = vmatprep.subr.mxu0 0.0
      %209 = vmatpush1.msra.mxu0 0.0
      %210 = vmatprep.subr.mxu0 0.0
      %211 = vmatpush1.msra.mxu0 0.0
      %212 = vmatprep.subr.mxu0 0.0
      %213 = vmatpush1.msra.mxu0 0.0
      %214 = vmatprep.subr.mxu0 0.0
      %215 = vmatpush1.msra.mxu0 0.0
      %216 = vmatprep.subr.mxu0 0.0
      %217 = vmatpush1.msra.mxu0 0.0
      %218 = vmatprep.subr.mxu0 0.0
      %219 = vmatpush1.msra.mxu0 0.0
      %220 = vmatprep.subr.mxu0 0.0
      %221 = vmatpush1.msra.mxu0 0.0
      %222 = vmatprep.subr.mxu0 0.0
      %223 = vmatpush1.msra.mxu0 0.0
      %224 = vmatprep.subr.mxu0 0.0
      %225 = vmatpush1.msra.mxu0 0.0
      %226 = vmatprep.subr.mxu0 0.0
      %227 = vmatpush1.msra.mxu0 0.0
      %228 = vmatprep.subr.mxu0 0.0
      %229 = vmatpush1.msra.mxu0 0.0
      %230 = vmatprep.subr.mxu0 0.0
      %231 = vmatpush1.msra.mxu0 0.0
      %232 = vmatprep.subr.mxu0 0.0
      %233 = vmatpush1.msra.mxu0 0.0
      %234 = vmatprep.subr.mxu0 0.0
      %235 = vmatpush1.msra.mxu0 0.0
      %236 = vmatprep.subr.mxu0 0.0
      %237 = vmatpush1.msra.mxu0 0.0
      %238 = vmatprep.subr.mxu0 0.0
      %239 = vmatpush1.msra.mxu0 0.0
      %240 = vmatprep.subr.mxu0 0.0
      %241 = vmatpush1.msra.mxu0 0.0
      %242 = vmatprep.subr.mxu0 0.0
      %243 = vmatpush1.msra.mxu0 0.0
      %244 = vmatprep.subr.mxu0 0.0
      %245 = vmatpush1.msra.mxu0 0.0
      %246 = vmatprep.subr.mxu0 0.0
      %247 = vmatpush1.msra.mxu0 0.0
      %248 = vmatprep.subr.mxu0 0.0
      %249 = vmatpush1.msra.mxu0 0.0
      %250 = vmatprep.subr.mxu0 0.0
      %251 = vmatpush1.msra.mxu0 0.0
      %252 = vmatprep.subr.mxu0 0.0
      %253 = vmatpush1.msra.mxu0 0.0
      %254 = vmatprep.mubr.f32.mxu0 0.0
      %255 = vmatmul.mubr.f32.gmra.mrb[0].mxu0 %v188
      %v256 = vpop.f32.mrb[0].mxu0
      %v257 = vadd.f32 0.0, %v256
      %v258 = vpop.f32.mrb[0].mxu0
      %259 = vdwg.mxu0
      %v261 = vsel %vm178, %v177, 0
      %263 = vmatprep.subr.mxu0 0.0
      %264 = vmatpush1.msra.mxu0 %v183
      %265 = vmatprep.subr.mxu0 0.0
      %266 = vmatpush1.msra.mxu0 0.0
      %267 = vmatprep.subr.mxu0 0.0
      %268 = vmatpush1.msra.mxu0 0.0
      %269 = vmatprep.subr.mxu0 0.0
      %270 = vmatpush1.msra.mxu0 0.0
      %271 = vmatprep.subr.mxu0 0.0
      %272 = vmatpush1.msra.mxu0 0.0
      %273 = vmatprep.subr.mxu0 0.0
      %274 = vmatpush1.msra.mxu0 0.0
      %275 = vmatprep.subr.mxu0 0.0
      %276 = vmatpush1.msra.mxu0 0.0
      %277 = vmatprep.subr.mxu0 0.0
      %278 = vmatpush1.msra.mxu0 0.0
      %279 = vmatprep.subr.mxu0 0.0
      %280 = vmatpush1.msra.mxu0 0.0
      %281 = vmatprep.subr.mxu0 0.0
      %282 = vmatpush1.msra.mxu0 0.0
      %283 = vmatprep.subr.mxu0 0.0
      %284 = vmatpush1.msra.mxu0 0.0
      %285 = vmatprep.subr.mxu0 0.0
      %286 = vmatpush1.msra.mxu0 0.0
      %287 = vmatprep.subr.mxu0 0.0
      %288 = vmatpush1.msra.mxu0 0.0
      %289 = vmatprep.subr.mxu0 0.0
      %290 = vmatpush1.msra.mxu0 0.0
      %291 = vmatprep.subr.mxu0 0.0
      %292 = vmatpush1.msra.mxu0 0.0
      %293 = vmatprep.subr.mxu0 0.0
      %294 = vmatpush1.msra.mxu0 0.0
      %295 = vmatprep.subr.mxu0 0.0
      %296 = vmatpush1.msra.mxu0 0.0
      %297 = vmatprep.subr.mxu0 0.0
      %298 = vmatpush1.msra.mxu0 0.0
      %299 = vmatprep.subr.mxu0 0.0
      %300 = vmatpush1.msra.mxu0 0.0
      %301 = vmatprep.subr.mxu0 0.0
      %302 = vmatpush1.msra.mxu0 0.0
      %303 = vmatprep.subr.mxu0 0.0
      %304 = vmatpush1.msra.mxu0 0.0
      %305 = vmatprep.subr.mxu0 0.0
      %306 = vmatpush1.msra.mxu0 0.0
      %307 = vmatprep.subr.mxu0 0.0
      %308 = vmatpush1.msra.mxu0 0.0
      %309 = vmatprep.subr.mxu0 0.0
      %310 = vmatpush1.msra.mxu0 0.0
      %311 = vmatprep.subr.mxu0 0.0
      %312 = vmatpush1.msra.mxu0 0.0
      %313 = vmatprep.subr.mxu0 0.0
      %314 = vmatpush1.msra.mxu0 0.0
      %315 = vmatprep.subr.mxu0 0.0
      %316 = vmatpush1.msra.mxu0 0.0
      %317 = vmatprep.subr.mxu0 0.0
      %318 = vmatpush1.msra.mxu0 0.0
      %319 = vmatprep.subr.mxu0 0.0
      %320 = vmatpush1.msra.mxu0 0.0
      %321 = vmatprep.subr.mxu0 0.0
      %322 = vmatpush1.msra.mxu0 0.0
      %323 = vmatprep.subr.mxu0 0.0
      %324 = vmatpush1.msra.mxu0 0.0
      %325 = vmatprep.subr.mxu0 0.0
      %326 = vmatpush1.msra.mxu0 0.0
      %327 = vmatprep.mubr.f32.mxu0 0.0
      %328 = vmatmul.mubr.f32.gmra.mrb[0].mxu0 %v261
      %v329 = vpop.f32.mrb[0].mxu0
      %v330 = vadd.f32 %v257, %v329
      %v331 = vpop.f32.mrb[0].mxu0
      %332 = vdwg.mxu0
      %v333 = vpack.c.bf16 %v330, %v330
      %vm334 = vcmask 60416
      %335 = vst.msk [vmem:[%s172] sm:$0xf] %vm334, %v333
      %v336 = vsel %vm178, %v330, 0.0
      %v337 = vrot.slane %v336, 4
      %v338 = vadd.f32 %v336, %v337
      %v339 = vrot.slane %v338, 2
      %v340 = vadd.f32 %v338, %v339
      %v341 = vrot.slane %v340, 1
      %v342 = vadd.f32 %v340, %v341
      %vm343 = vcmask 57344
      %344 = vst.msk [vmem:[%s176] sm:$0x1] %vm343, %v342
      %v345 = vmul.f32 %v330, %v330
      %v346 = vsel %vm178, %v345, 0.0
      %v347 = vrot.slane %v346, 4
      %v348 = vadd.f32 %v346, %v347
      %v349 = vrot.slane %v348, 2
      %v350 = vadd.f32 %v348, %v349
      %v351 = vrot.slane %v350, 1
      %v352 = vadd.f32 %v350, %v351
      %353 = vst.msk [vmem:[%s176 + $0x1] sm:$0x1] %vm343, %v352
      %p354 = scmp.lt.s32.totalorder %s15, 1
      %s355 = scalar_select %p354, %s15, 1
      %s356 = smul.addr %s355, 4
      %s357 = scalar_lea.vmem %s2, %s356
      %p358 = scmp.lt.s32.totalorder %s15, 1
      %s359 = scalar_select %p358, %s15, 1
      %s360 = smul.addr %s359, 2
      %s361 = scalar_lea.vmem %s3, %s360
      // Predicated region
      $region29: #{basic_block_1d_forward.3} parent=27 // pred_check
        %p362 = pneg %p80
      $region30: #{basic_block_1d_forward.3} parent=27 // pred_check_branch
        %364 = sbr.rel (%p362) target = $region32
      $region31: #{basic_block_1d_forward.3} parent=27 // pred_region
        _
      $region32: #{basic_block_1d_forward.3} parent=27 // pred_fallthru
        _
      // Predicated region
      $region33: #{basic_block_1d_forward.3} parent=27 // pred_check
        %p365 = pneg %p106
      $region34: #{basic_block_1d_forward.3} parent=27 // pred_check_branch
        %367 = sbr.rel (%p365) target = $region36
      $region35: #{basic_block_1d_forward.3} parent=27 // pred_region
        _
      $region36: #{basic_block_1d_forward.3} parent=27 // pred_fallthru
        _
    $region28: #{basic_block_1d_forward.3} parent=5 // pred_fallthru
      _
    %p368 = scmp.le.s32.totalorder 2, %s10
    // Predicated region
    $region37: #{basic_block_1d_forward.3} parent=5 // pred_check
      %p369 = pneg %p368
    $region38: #{basic_block_1d_forward.3} parent=5 // pred_check_branch
      %371 = sbr.rel (%p369) target = $region40
    $region39: #{basic_block_1d_forward.3} parent=5 // pred_region
      %s372 = ssub.s32 %s10, 2
      // Predicated region
      $region41: #{basic_block_1d_forward.3} parent=39 // pred_check
        %p373 = pneg %p86
      $region42: #{basic_block_1d_forward.3} parent=39 // pred_check_branch
        %375 = sbr.rel (%p373) target = $region44
      $region43: #{basic_block_1d_forward.3} parent=39 // pred_region
        %p376 = scmp.lt.s32.totalorder %s16, 1
        %s377 = scalar_select %p376, %s16, 1
        %s378 = smul.addr %s377, 4
        %s379 = scalar_lea.vmem %s2, %s378
      $region44: #{basic_block_1d_forward.3} parent=39 // pred_fallthru
        _
      // Predicated region
      $region45: #{basic_block_1d_forward.3} parent=39 // pred_check
        %p380 = pneg %p112
      $region46: #{basic_block_1d_forward.3} parent=39 // pred_check_branch
        %382 = sbr.rel (%p380) target = $region48
      $region47: #{basic_block_1d_forward.3} parent=39 // pred_region
        %p383 = scmp.lt.s32.totalorder %s16, 1
        %s384 = scalar_select %p383, %s16, 1
        %s385 = smul.addr %s384, 2
        %s386 = scalar_lea.vmem %s3, %s385
      $region48: #{basic_block_1d_forward.3} parent=39 // pred_fallthru
        _
    $region40: #{basic_block_1d_forward.3} parent=5 // pred_fallthru
      _
  $region6: #{basic_block_1d_forward.3} parent=0 // loop_footer
    %s14 = sadd.s32 1, %s10
  $region7: #{basic_block_1d_forward.3} parent=0 // loop_footer_branch
    %9 = sbr.rel target = $region3
  $region8: #{basic_block_1d_forward.3} parent=0 // loop_exit
    _

// kernel: basic_block_1d_forward.5
$region0: #{basic_block_1d_forward.5}
  #allocation0 [shape = 'u32[]', space=smem, size = 0x4, offset = 0x4, fixed_abs, tag = 'smem constant byte address 0x4 - core index']
  #allocation1 [shape = 'u32[144,128]{1,0:T(1,128)}', space=vmem, size = 0x12000, scoped, tag = 'internal scratch']
  %s0 = inlined_call_operand.vmem [shape: bf16[2,8,8], index: 0, kind: input, shape index: {}]
  %s1 = inlined_call_operand.vmem [shape: f32[1,8], index: 1, kind: input, shape index: {}]
  %s2 = inlined_call_operand.vmem [shape: f32[1,8], index: 2, kind: input, shape index: {}]
  %s3 = inlined_call_operand.vmem [shape: f32[2,8,8], index: 3, kind: input, shape index: {}]
  %s4 = inlined_call_operand.vmem [shape: f32[8,8], index: 4, kind: input, shape index: {}]
  %s5 = inlined_call_operand.vmem [shape: f32[2,8,8], index: 5, kind: output, shape index: {}]
  %s6 = sld [smem:[#allocation0]]
  $region53: #{basic_block_1d_forward.5} parent=0
    _
  %s8 = ssub.s32 1, %s6
  %s9 = scalar_select 0, %s8, %s6
  loop: start=0, step=1, limit=4
  $region2: #{basic_block_1d_forward.5} parent=0 // loop_pre_header
    _
  $region3: #{basic_block_1d_forward.5} parent=0 // loop_header
    %s11 = sphi 0, %s15
    %p12 = scmp.ge.s32.totalorder %s11, 4
    %s21 = sphi 0, %s23
    %s24 = sphi 0, %s21
    %s25 = sphi 0, %s24
    %s41 = sphi 0, %s25
    %s45 = sphi 0, %s45
    %s47 = sphi 0, %s45
    %s48 = sphi 0, %s47
    %s62 = sphi 0, %s48
    %s66 = sphi 0, %s66
    %s68 = sphi 0, %s66
    %s69 = sphi 0, %s68
    %s83 = sphi 0, %s69
    %s89 = sphi 0, %s91
    %s92 = sphi 0, %s89
    %s93 = sphi 0, %s92
    %s109 = sphi 0, %s93
    %s113 = sphi 0, %s113
    %s115 = sphi 0, %s113
    %s116 = sphi 0, %s115
    %s130 = sphi 0, %s116
    %s136 = sphi 0, %s138
    %s139 = sphi 0, %s136
    %s140 = sphi 0, %s139
    %s156 = sphi 0, %s140
  $region4: #{basic_block_1d_forward.5} parent=0 // loop_header_branch
    %14 = sbr.rel (%p12) target = $region8
  $region5: #{basic_block_1d_forward.5} parent=0 // loop_body
    %s16 = ssub.s32 %s11, 1
    %s17 = ssub.s32 %s11, 2
    %s18 = sadd.s32 %s11, 1
    %s19 = ssub.s32 %s11, %s18
    %p20 = scmp.eq.s32.totalorder %s19, 0
    %s22 = sadd.s32 %s21, 1
    %s23 = scalar_select %p20, %s21, %s22
    %p26 = pneg %p20
    %p27 = scmp.eq.s32.totalorder %s11, 1
    %p28 = por %p26, %p27
    %p29 = scmp.ne.s32.totalorder %s21, %s24
    %p30 = scmp.eq.s32.totalorder %s11, 0
    %p31 = por %p29, %p30
    %p32 = scmp.ne.s32.totalorder %s21, %s24
    %p33 = scmp.eq.s32.totalorder %s16, 1
    %p34 = por %p32, %p33
    %p35 = scmp.ne.s32.totalorder %s24, %s25
    %p36 = scmp.eq.s32.totalorder %s16, 0
    %p37 = por %p35, %p36
    %p38 = scmp.ne.s32.totalorder %s24, %s25
    %p39 = scmp.eq.s32.totalorder %s17, 1
    %p40 = por %p38, %p39
    %p42 = scmp.ne.s32.totalorder %s25, %s41
    %p43 = scmp.eq.s32.totalorder %s17, 0
    %p44 = por %p42, %p43
    %s46 = sadd.s32 %s45, 1
    %p49 = scmp.eq.s32.totalorder %s11, 1
    %p50 = scmp.ne.s32.totalorder %s45, %s47
    %p51 = scmp.eq.s32.totalorder %s11, 0
    %p52 = por %p50, %p51
    %p53 = scmp.ne.s32.totalorder %s45, %s47
    %p54 = scmp.eq.s32.totalorder %s16, 1
    %p55 = por %p53, %p54
    %p56 = scmp.ne.s32.totalorder %s47, %s48
    %p57 = scmp.eq.s32.totalorder %s16, 0
    %p58 = por %p56, %p57
    %p59 = scmp.ne.s32.totalorder %s47, %s48
    %p60 = scmp.eq.s32.totalorder %s17, 1
    %p61 = por %p59, %p60
    %p63 = scmp.ne.s32.totalorder %s48, %s62
    %p64 = scmp.eq.s32.totalorder %s17, 0
    %p65 = por %p63, %p64
    %s67 = sadd.s32 %s66, 1
    %p70 = scmp.eq.s32.totalorder %s11, 1
    %p71 = scmp.ne.s32.totalorder %s66, %s68
    %p72 = scmp.eq.s32.totalorder %s11, 0
    %p73 = por %p71, %p72
    %p74 = scmp.ne.s32.totalorder %s66, %s68
    %p75 = scmp.eq.s32.totalorder %s16, 1
    %p76 = por %p74, %p75
    %p77 = scmp.ne.s32.totalorder %s68, %s69
    %p78 = scmp.eq.s32.totalorder %s16, 0
    %p79 = por %p77, %p78
    %p80 = scmp.ne.s32.totalorder %s68, %s69
    %p81 = scmp.eq.s32.totalorder %s17, 1
    %p82 = por %p80, %p81
    %p84 = scmp.ne.s32.totalorder %s69, %s83
    %p85 = scmp.eq.s32.totalorder %s17, 0
    %p86 = por %p84, %p85
    %s87 = ssub.s32 %s11, %s18
    %p88 = scmp.eq.s32.totalorder %s87, 0
    %s90 = sadd.s32 %s89, 1
    %s91 = scalar_select %p88, %s89, %s90
    %p94 = pneg %p88
    %p95 = scmp.eq.s32.totalorder %s11, 1
    %p96 = por %p94, %p95
    %p97 = scmp.ne.s32.totalorder %s89, %s92
    %p98 = scmp.eq.s32.totalorder %s11, 0
    %p99 = por %p97, %p98
    %p100 = scmp.ne.s32.totalorder %s89, %s92
    %p101 = scmp.eq.s32.totalorder %s16, 1
    %p102 = por %p100, %p101
    %p103 = scmp.ne.s32.totalorder %s92, %s93
    %p104 = scmp.eq.s32.totalorder %s16, 0
    %p105 = por %p103, %p104
    %p106 = scmp.ne.s32.totalorder %s92, %s93
    %p107 = scmp.eq.s32.totalorder %s17, 1
    %p108 = por %p106, %p107
    %p110 = scmp.ne.s32.totalorder %s93, %s109
    %p111 = scmp.eq.s32.totalorder %s17, 0
    %p112 = por %p110, %p111
    %s114 = sadd.s32 %s113, 1
    %p117 = scmp.eq.s32.totalorder %s11, 1
    %p118 = scmp.ne.s32.totalorder %s113, %s115
    %p119 = scmp.eq.s32.totalorder %s11, 0
    %p120 = por %p118, %p119
    %p121 = scmp.ne.s32.totalorder %s113, %s115
    %p122 = scmp.eq.s32.totalorder %s16, 1
    %p123 = por %p121, %p122
    %p124 = scmp.ne.s32.totalorder %s115, %s116
    %p125 = scmp.eq.s32.totalorder %s16, 0
    %p126 = por %p124, %p125
    %p127 = scmp.ne.s32.totalorder %s115, %s116
    %p128 = scmp.eq.s32.totalorder %s17, 1
    %p129 = por %p127, %p128
    %p131 = scmp.ne.s32.totalorder %s116, %s130
    %p132 = scmp.eq.s32.totalorder %s17, 0
    %p133 = por %p131, %p132
    %s134 = ssub.s32 %s11, %s18
    %p135 = scmp.eq.s32.totalorder %s134, 0
    %s137 = sadd.s32 %s136, 1
    %s138 = scalar_select %p135, %s136, %s137
    %p141 = pneg %p135
    %p142 = scmp.eq.s32.totalorder %s11, 1
    %p143 = por %p141, %p142
    %p144 = scmp.ne.s32.totalorder %s136, %s139
    %p145 = scmp.eq.s32.totalorder %s11, 0
    %p146 = por %p144, %p145
    %p147 = scmp.ne.s32.totalorder %s136, %s139
    %p148 = scmp.eq.s32.totalorder %s16, 1
    %p149 = por %p147, %p148
    %p150 = scmp.ne.s32.totalorder %s139, %s140
    %p151 = scmp.eq.s32.totalorder %s16, 0
    %p152 = por %p150, %p151
    %p153 = scmp.ne.s32.totalorder %s139, %s140
    %p154 = scmp.eq.s32.totalorder %s17, 1
    %p155 = por %p153, %p154
    %p157 = scmp.ne.s32.totalorder %s140, %s156
    %p158 = scmp.eq.s32.totalorder %s17, 0
    %p159 = por %p157, %p158
    %p160 = scmp.le.s32.totalorder 1, %s11
    %p161 = scmp.lt.s32.totalorder %s11, 3
    %p162 = pnand %p160, %p161
    %p163 = pneg %p162
    // Predicated region
    $region9: #{basic_block_1d_forward.5} parent=5 // pred_check
      _
    $region10: #{basic_block_1d_forward.5} parent=5 // pred_check_branch
      %165 = sbr.rel (%p162) target = $region12
    $region11: #{basic_block_1d_forward.5} parent=5 // pred_region
      %s166 = ssub.s32 %s11, 1
      // Predicated region
      $region13: #{basic_block_1d_forward.5} parent=11 // pred_check
        %p167 = pneg %p58
      $region14: #{basic_block_1d_forward.5} parent=11 // pred_check_branch
        %169 = sbr.rel (%p167) target = $region16
      $region15: #{basic_block_1d_forward.5} parent=11 // pred_region
        _
      $region16: #{basic_block_1d_forward.5} parent=11 // pred_fallthru
        _
      // Predicated region
      $region17: #{basic_block_1d_forward.5} parent=11 // pred_check
        %p170 = pneg %p79
      $region18: #{basic_block_1d_forward.5} parent=11 // pred_check_branch
        %172 = sbr.rel (%p170) target = $region20
      $region19: #{basic_block_1d_forward.5} parent=11 // pred_region
        _
      $region20: #{basic_block_1d_forward.5} parent=11 // pred_fallthru
        _
      // Predicated region
      $region21: #{basic_block_1d_forward.5} parent=11 // pred_check
        %p173 = pneg %p126
      $region22: #{basic_block_1d_forward.5} parent=11 // pred_check_branch
        %175 = sbr.rel (%p173) target = $region24
      $region23: #{basic_block_1d_forward.5} parent=11 // pred_region
        _
      $region24: #{basic_block_1d_forward.5} parent=11 // pred_fallthru
        _
    $region12: #{basic_block_1d_forward.5} parent=5 // pred_fallthru
      _
    %p176 = scmp.lt.s32.totalorder %s11, 2
    // Predicated region
    $region25: #{basic_block_1d_forward.5} parent=5 // pred_check
      %p177 = pneg %p176
    $region26: #{basic_block_1d_forward.5} parent=5 // pred_check_branch
      %179 = sbr.rel (%p177) target = $region28
    $region27: #{basic_block_1d_forward.5} parent=5 // pred_region
      // Predicated region
      $region29: #{basic_block_1d_forward.5} parent=27 // pred_check
        %p180 = pneg %p31
      $region30: #{basic_block_1d_forward.5} parent=27 // pred_check_branch
        %182 = sbr.rel (%p180) target = $region32
      $region31: #{basic_block_1d_forward.5} parent=27 // pred_region
        %p183 = scmp.lt.s32.totalorder %s11, 1
        %s184 = scalar_select %p183, %s11, 1
        %s185 = smul.addr %s184, 4
        %s186 = scalar_lea.vmem %s0, %s185
      $region32: #{basic_block_1d_forward.5} parent=27 // pred_fallthru
        _
      // Predicated region
      $region33: #{basic_block_1d_forward.5} parent=27 // pred_check
        %p187 = pneg %p99
      $region34: #{basic_block_1d_forward.5} parent=27 // pred_check_branch
        %189 = sbr.rel (%p187) target = $region36
      $region35: #{basic_block_1d_forward.5} parent=27 // pred_region
        %p190 = scmp.lt.s32.totalorder %s11, 1
        %s191 = scalar_select %p190, %s11, 1
        %s192 = smul.addr %s191, 8
        %s193 = scalar_lea.vmem %s3, %s192
      $region36: #{basic_block_1d_forward.5} parent=27 // pred_fallthru
        _
    $region28: #{basic_block_1d_forward.5} parent=5 // pred_fallthru
      _
    %p194 = scmp.le.s32.totalorder 1, %s11
    %p195 = scmp.lt.s32.totalorder %s11, 3
    %p196 = pnand %p194, %p195
    %p197 = pneg %p196
    // Predicated region
    $region37: #{basic_block_1d_forward.5} parent=5 // pred_check
      _
    $region38: #{basic_block_1d_forward.5} parent=5 // pred_check_branch
      %199 = sbr.rel (%p196) target = $region40
    $region39: #{basic_block_1d_forward.5} parent=5 // pred_region
      %s200 = ssub.s32 %s11, 1
      %p201 = scmp.lt.s32.totalorder %s16, 1
      %s202 = scalar_select %p201, %s16, 1
      %s203 = smul.addr %s202, 4
      %s204 = scalar_lea.vmem %s0, %s203
      %p205 = pneg %p37
      %p206 = pneg %p34
      %p207 = pneg %p58
      %p208 = pneg %p55
      %p209 = pneg %p79
      %p210 = pneg %p76
      %p211 = scmp.lt.s32.totalorder %s16, 1
      %s212 = scalar_select %p211, %s16, 1
      %s213 = smul.addr %s212, 8
      %s214 = scalar_lea.vmem %s3, %s213
      %p215 = pneg %p105
      %p216 = pneg %p102
      %p217 = pneg %p126
      %p218 = pneg %p123
      %p219 = pneg %p152
      %p220 = pneg %p149
      %p221 = scmp.lt.s32.totalorder %s16, 1
      %s222 = scalar_select %p221, %s16, 1
      %s223 = smul.addr %s222, 8
      %s224 = scalar_lea.vmem %s5, %s223
      %p225 = scmp.lt.s32.totalorder %s16, 1
      %s226 = scalar_select %p225, %s16, 1
      %s227 = smul.addr %s226, 4
      %s228 = scalar_lea.vmem %s0, %s227
      %p229 = scmp.lt.s32.totalorder %s16, 1
      %s230 = scalar_select %p229, %s16, 1
      %s231 = smul.addr %s230, 8
      %s232 = scalar_lea.vmem %s3, %s231
      %p233 = scmp.lt.s32.totalorder %s16, 1
      %s234 = scalar_select %p233, %s16, 1
      %s235 = smul.addr %s234, 8
      %s236 = scalar_lea.vmem %s5, %s235
      %v237 = vld [vmem:[%s232] sm:$0xff]
      %v238 = vld [vmem:[%s4] sm:$0xff]
      %vm239 = vcmask 64512
      %v241 = vsel %vm239, %v237, 0
      %243 = vmatprep.subr.mxu0 0.0
      %244 = vmatpush1.msra.mxu0 %v238
      %245 = vmatprep.subr.mxu0 0.0
      %246 = vmatpush1.msra.mxu0 0.0
      %247 = vmatprep.subr.mxu0 0.0
      %248 = vmatpush1.msra.mxu0 0.0
      %249 = vmatprep.subr.mxu0 0.0
      %250 = vmatpush1.msra.mxu0 0.0
      %251 = vmatprep.subr.mxu0 0.0
      %252 = vmatpush1.msra.mxu0 0.0
      %253 = vmatprep.subr.mxu0 0.0
      %254 = vmatpush1.msra.mxu0 0.0
      %255 = vmatprep.subr.mxu0 0.0
      %256 = vmatpush1.msra.mxu0 0.0
      %257 = vmatprep.subr.mxu0 0.0
      %258 = vmatpush1.msra.mxu0 0.0
      %259 = vmatprep.subr.mxu0 0.0
      %260 = vmatpush1.msra.mxu0 0.0
      %261 = vmatprep.subr.mxu0 0.0
      %262 = vmatpush1.msra.mxu0 0.0
      %263 = vmatprep.subr.mxu0 0.0
      %264 = vmatpush1.msra.mxu0 0.0
      %265 = vmatprep.subr.mxu0 0.0
      %266 = vmatpush1.msra.mxu0 0.0
      %267 = vmatprep.subr.mxu0 0.0
      %268 = vmatpush1.msra.mxu0 0.0
      %269 = vmatprep.subr.mxu0 0.0
      %270 = vmatpush1.msra.mxu0 0.0
      %271 = vmatprep.subr.mxu0 0.0
      %272 = vmatpush1.msra.mxu0 0.0
      %273 = vmatprep.subr.mxu0 0.0
      %274 = vmatpush1.msra.mxu0 0.0
      %275 = vmatprep.subr.mxu0 0.0
      %276 = vmatpush1.msra.mxu0 0.0
      %277 = vmatprep.subr.mxu0 0.0
      %278 = vmatpush1.msra.mxu0 0.0
      %279 = vmatprep.subr.mxu0 0.0
      %280 = vmatpush1.msra.mxu0 0.0
      %281 = vmatprep.subr.mxu0 0.0
      %282 = vmatpush1.msra.mxu0 0.0
      %283 = vmatprep.subr.mxu0 0.0
      %284 = vmatpush1.msra.mxu0 0.0
      %285 = vmatprep.subr.mxu0 0.0
      %286 = vmatpush1.msra.mxu0 0.0
      %287 = vmatprep.subr.mxu0 0.0
      %288 = vmatpush1.msra.mxu0 0.0
      %289 = vmatprep.subr.mxu0 0.0
      %290 = vmatpush1.msra.mxu0 0.0
      %291 = vmatprep.subr.mxu0 0.0
      %292 = vmatpush1.msra.mxu0 0.0
      %293 = vmatprep.subr.mxu0 0.0
      %294 = vmatpush1.msra.mxu0 0.0
      %295 = vmatprep.subr.mxu0 0.0
      %296 = vmatpush1.msra.mxu0 0.0
      %297 = vmatprep.subr.mxu0 0.0
      %298 = vmatpush1.msra.mxu0 0.0
      %299 = vmatprep.subr.mxu0 0.0
      %300 = vmatpush1.msra.mxu0 0.0
      %301 = vmatprep.subr.mxu0 0.0
      %302 = vmatpush1.msra.mxu0 0.0
      %303 = vmatprep.subr.mxu0 0.0
      %304 = vmatpush1.msra.mxu0 0.0
      %305 = vmatprep.subr.mxu0 0.0
      %306 = vmatpush1.msra.mxu0 0.0
      %307 = vmatprep.mubr.f32.mxu0 0.0
      %308 = vmatmul.mubr.f32.gmra.mrb[0].mxu0 %v241
      %v309 = vpop.f32.mrb[0].mxu0
      %v310 = vadd.f32 0.0, %v309
      %v311 = vpop.f32.mrb[0].mxu0
      %312 = vdwg.mxu0
      %v313 = vld [vmem:[%s228] sm:$0xf]
      %v314 = vunpack.c.l.bf16 %v313
      %v315 = vld [vmem:[%s1] sm:$0x1]
      %v317 = vlaneseq
      %v318 = vshrl.u32 %v317, 7
      %v319 = vsub.s32 0, %v318
      %v320 = vrot.slane %v315, %v319
      %v322 = vmul.f32 %v314, %v320
      %v323 = vld [vmem:[%s2] sm:$0x1]
      %v325 = vlaneseq
      %v326 = vshrl.u32 %v325, 7
      %v327 = vsub.s32 0, %v326
      %v328 = vrot.slane %v323, %v327
      %v330 = vadd.f32 %v322, %v328
      %v331 = vadd.f32 %v330, %v310
      %v332 = vmax.f32 %v331, 0.0
      %333 = vst.msk [vmem:[%s236] sm:$0xff] %vm239, %v332
      %p334 = scmp.lt.s32.totalorder %s16, 1
      %s335 = scalar_select %p334, %s16, 1
      %s336 = smul.addr %s335, 8
      %s337 = scalar_lea.vmem %s5, %s336
      // Predicated region
      $region41: #{basic_block_1d_forward.5} parent=39 // pred_check
        %p338 = pneg %p149
      $region42: #{basic_block_1d_forward.5} parent=39 // pred_check_branch
        %340 = sbr.rel (%p338) target = $region44
      $region43: #{basic_block_1d_forward.5} parent=39 // pred_region
        _
      $region44: #{basic_block_1d_forward.5} parent=39 // pred_fallthru
        _
    $region40: #{basic_block_1d_forward.5} parent=5 // pred_fallthru
      _
    %p341 = scmp.le.s32.totalorder 2, %s11
    // Predicated region
    $region45: #{basic_block_1d_forward.5} parent=5 // pred_check
      %p342 = pneg %p341
    $region46: #{basic_block_1d_forward.5} parent=5 // pred_check_branch
      %344 = sbr.rel (%p342) target = $region48
    $region47: #{basic_block_1d_forward.5} parent=5 // pred_region
      %s345 = ssub.s32 %s11, 2
      // Predicated region
      $region49: #{basic_block_1d_forward.5} parent=47 // pred_check
        %p346 = pneg %p155
      $region50: #{basic_block_1d_forward.5} parent=47 // pred_check_branch
        %348 = sbr.rel (%p346) target = $region52
      $region51: #{basic_block_1d_forward.5} parent=47 // pred_region
        %p349 = scmp.lt.s32.totalorder %s17, 1
        %s350 = scalar_select %p349, %s17, 1
        %s351 = smul.addr %s350, 8
        %s352 = scalar_lea.vmem %s5, %s351
      $region52: #{basic_block_1d_forward.5} parent=47 // pred_fallthru
        _
    $region48: #{basic_block_1d_forward.5} parent=5 // pred_fallthru
      _
  $region6: #{basic_block_1d_forward.5} parent=0 // loop_footer
    %s15 = sadd.s32 1, %s11
  $region7: #{basic_block_1d_forward.5} parent=0 // loop_footer_branch
    %10 = sbr.rel target = $region3
  $region8: #{basic_block_1d_forward.5} parent=0 // loop_exit
    _

// kernel: basic_block_1d_forward.4
$region0: #{basic_block_1d_forward.4}
  #allocation0 [shape = 'u32[]', space=smem, size = 0x4, offset = 0x4, fixed_abs, tag = 'smem constant byte address 0x4 - core index']
  #allocation1 [shape = 'u32[144,128]{1,0:T(1,128)}', space=vmem, size = 0x12000, scoped, tag = 'internal scratch']
  #allocation2 [shape = 'f32[24,8]{1,0:T(8,128)}', space=vmem, size = 0x3000, scoped, tag = 'scratch operand']
  %s0 = inlined_call_operand.vmem [shape: bf16[2,8,8], index: 0, kind: input, shape index: {}]
  %s1 = inlined_call_operand.vmem [shape: f32[3,8,8], index: 1, kind: input, shape index: {}]
  %s2 = inlined_call_operand.vmem [shape: f32[1,8], index: 2, kind: input, shape index: {}]
  %s3 = inlined_call_operand.vmem [shape: f32[1,8], index: 3, kind: input, shape index: {}]
  %s4 = inlined_call_operand.vmem [shape: bf16[2,8,8], index: 4, kind: output, shape index: {0}]
  %s5 = inlined_call_operand.vmem [shape: f32[2,2,8], index: 5, kind: output, shape index: {1}]
  %6 = xla_tuple %s4, %s5
  %s7 = sld [smem:[#allocation0]]
  $region57: #{basic_block_1d_forward.4} parent=0
    _
  %s9 = ssub.s32 1, %s7
  %s10 = scalar_select 0, %s9, %s7
  loop: start=0, step=1, limit=4
  $region2: #{basic_block_1d_forward.4} parent=0 // loop_pre_header
    _
  $region3: #{basic_block_1d_forward.4} parent=0 // loop_header
    %s12 = sphi 0, %s16
    %p13 = scmp.ge.s32.totalorder %s12, 4
    %s22 = sphi 0, %s24
    %s25 = sphi 0, %s22
    %s26 = sphi 0, %s25
    %s42 = sphi 0, %s26
    %s46 = sphi 0, %s46
    %s48 = sphi 0, %s46
    %s49 = sphi 0, %s48
    %s63 = sphi 0, %s49
    %s67 = sphi 0, %s67
    %s69 = sphi 0, %s67
    %s70 = sphi 0, %s69
    %s84 = sphi 0, %s70
    %s88 = sphi 0, %s88
    %s90 = sphi 0, %s88
    %s91 = sphi 0, %s90
    %s105 = sphi 0, %s91
    %s111 = sphi 0, %s113
    %s114 = sphi 0, %s111
    %s115 = sphi 0, %s114
    %s131 = sphi 0, %s115
    %s137 = sphi 0, %s139
    %s140 = sphi 0, %s137
    %s141 = sphi 0, %s140
    %s157 = sphi 0, %s141
  $region4: #{basic_block_1d_forward.4} parent=0 // loop_header_branch
    %15 = sbr.rel (%p13) target = $region8
  $region5: #{basic_block_1d_forward.4} parent=0 // loop_body
    %s17 = ssub.s32 %s12, 1
    %s18 = ssub.s32 %s12, 2
    %s19 = sadd.s32 %s12, 1
    %s20 = ssub.s32 %s12, %s19
    %p21 = scmp.eq.s32.totalorder %s20, 0
    %s23 = sadd.s32 %s22, 1
    %s24 = scalar_select %p21, %s22, %s23
    %p27 = pneg %p21
    %p28 = scmp.eq.s32.totalorder %s12, 1
    %p29 = por %p27, %p28
    %p30 = scmp.ne.s32.totalorder %s22, %s25
    %p31 = scmp.eq.s32.totalorder %s12, 0
    %p32 = por %p30, %p31
    %p33 = scmp.ne.s32.totalorder %s22, %s25
    %p34 = scmp.eq.s32.totalorder %s17, 1
    %p35 = por %p33, %p34
    %p36 = scmp.ne.s32.totalorder %s25, %s26
    %p37 = scmp.eq.s32.totalorder %s17, 0
    %p38 = por %p36, %p37
    %p39 = scmp.ne.s32.totalorder %s25, %s26
    %p40 = scmp.eq.s32.totalorder %s18, 1
    %p41 = por %p39, %p40
    %p43 = scmp.ne.s32.totalorder %s26, %s42
    %p44 = scmp.eq.s32.totalorder %s18, 0
    %p45 = por %p43, %p44
    %s47 = sadd.s32 %s46, 1
    %p50 = scmp.eq.s32.totalorder %s12, 1
    %p51 = scmp.ne.s32.totalorder %s46, %s48
    %p52 = scmp.eq.s32.totalorder %s12, 0
    %p53 = por %p51, %p52
    %p54 = scmp.ne.s32.totalorder %s46, %s48
    %p55 = scmp.eq.s32.totalorder %s17, 1
    %p56 = por %p54, %p55
    %p57 = scmp.ne.s32.totalorder %s48, %s49
    %p58 = scmp.eq.s32.totalorder %s17, 0
    %p59 = por %p57, %p58
    %p60 = scmp.ne.s32.totalorder %s48, %s49
    %p61 = scmp.eq.s32.totalorder %s18, 1
    %p62 = por %p60, %p61
    %p64 = scmp.ne.s32.totalorder %s49, %s63
    %p65 = scmp.eq.s32.totalorder %s18, 0
    %p66 = por %p64, %p65
    %s68 = sadd.s32 %s67, 1
    %p71 = scmp.eq.s32.totalorder %s12, 1
    %p72 = scmp.ne.s32.totalorder %s67, %s69
    %p73 = scmp.eq.s32.totalorder %s12, 0
    %p74 = por %p72, %p73
    %p75 = scmp.ne.s32.totalorder %s67, %s69
    %p76 = scmp.eq.s32.totalorder %s17, 1
    %p77 = por %p75, %p76
    %p78 = scmp.ne.s32.totalorder %s69, %s70
    %p79 = scmp.eq.s32.totalorder %s17, 0
    %p80 = por %p78, %p79
    %p81 = scmp.ne.s32.totalorder %s69, %s70
    %p82 = scmp.eq.s32.totalorder %s18, 1
    %p83 = por %p81, %p82
    %p85 = scmp.ne.s32.totalorder %s70, %s84
    %p86 = scmp.eq.s32.totalorder %s18, 0
    %p87 = por %p85, %p86
    %s89 = sadd.s32 %s88, 1
    %p92 = scmp.eq.s32.totalorder %s12, 1
    %p93 = scmp.ne.s32.totalorder %s88, %s90
    %p94 = scmp.eq.s32.totalorder %s12, 0
    %p95 = por %p93, %p94
    %p96 = scmp.ne.s32.totalorder %s88, %s90
    %p97 = scmp.eq.s32.totalorder %s17, 1
    %p98 = por %p96, %p97
    %p99 = scmp.ne.s32.totalorder %s90, %s91
    %p100 = scmp.eq.s32.totalorder %s17, 0
    %p101 = por %p99, %p100
    %p102 = scmp.ne.s32.totalorder %s90, %s91
    %p103 = scmp.eq.s32.totalorder %s18, 1
    %p104 = por %p102, %p103
    %p106 = scmp.ne.s32.totalorder %s91, %s105
    %p107 = scmp.eq.s32.totalorder %s18, 0
    %p108 = por %p106, %p107
    %s109 = ssub.s32 %s12, %s19
    %p110 = scmp.eq.s32.totalorder %s109, 0
    %s112 = sadd.s32 %s111, 1
    %s113 = scalar_select %p110, %s111, %s112
    %p116 = pneg %p110
    %p117 = scmp.eq.s32.totalorder %s12, 1
    %p118 = por %p116, %p117
    %p119 = scmp.ne.s32.totalorder %s111, %s114
    %p120 = scmp.eq.s32.totalorder %s12, 0
    %p121 = por %p119, %p120
    %p122 = scmp.ne.s32.totalorder %s111, %s114
    %p123 = scmp.eq.s32.totalorder %s17, 1
    %p124 = por %p122, %p123
    %p125 = scmp.ne.s32.totalorder %s114, %s115
    %p126 = scmp.eq.s32.totalorder %s17, 0
    %p127 = por %p125, %p126
    %p128 = scmp.ne.s32.totalorder %s114, %s115
    %p129 = scmp.eq.s32.totalorder %s18, 1
    %p130 = por %p128, %p129
    %p132 = scmp.ne.s32.totalorder %s115, %s131
    %p133 = scmp.eq.s32.totalorder %s18, 0
    %p134 = por %p132, %p133
    %s135 = ssub.s32 %s12, %s19
    %p136 = scmp.eq.s32.totalorder %s135, 0
    %s138 = sadd.s32 %s137, 1
    %s139 = scalar_select %p136, %s137, %s138
    %p142 = pneg %p136
    %p143 = scmp.eq.s32.totalorder %s12, 1
    %p144 = por %p142, %p143
    %p145 = scmp.ne.s32.totalorder %s137, %s140
    %p146 = scmp.eq.s32.totalorder %s12, 0
    %p147 = por %p145, %p146
    %p148 = scmp.ne.s32.totalorder %s137, %s140
    %p149 = scmp.eq.s32.totalorder %s17, 1
    %p150 = por %p148, %p149
    %p151 = scmp.ne.s32.totalorder %s140, %s141
    %p152 = scmp.eq.s32.totalorder %s17, 0
    %p153 = por %p151, %p152
    %p154 = scmp.ne.s32.totalorder %s140, %s141
    %p155 = scmp.eq.s32.totalorder %s18, 1
    %p156 = por %p154, %p155
    %p158 = scmp.ne.s32.totalorder %s141, %s157
    %p159 = scmp.eq.s32.totalorder %s18, 0
    %p160 = por %p158, %p159
    %p161 = scmp.le.s32.totalorder 1, %s12
    %p162 = scmp.lt.s32.totalorder %s12, 3
    %p163 = pnand %p161, %p162
    %p164 = pneg %p163
    // Predicated region
    $region9: #{basic_block_1d_forward.4} parent=5 // pred_check
      _
    $region10: #{basic_block_1d_forward.4} parent=5 // pred_check_branch
      %166 = sbr.rel (%p163) target = $region12
    $region11: #{basic_block_1d_forward.4} parent=5 // pred_region
      %s167 = ssub.s32 %s12, 1
      // Predicated region
      $region13: #{basic_block_1d_forward.4} parent=11 // pred_check
        %p168 = pneg %p59
      $region14: #{basic_block_1d_forward.4} parent=11 // pred_check_branch
        %170 = sbr.rel (%p168) target = $region16
      $region15: #{basic_block_1d_forward.4} parent=11 // pred_region
        _
      $region16: #{basic_block_1d_forward.4} parent=11 // pred_fallthru
        _
      // Predicated region
      $region17: #{basic_block_1d_forward.4} parent=11 // pred_check
        %p171 = pneg %p80
      $region18: #{basic_block_1d_forward.4} parent=11 // pred_check_branch
        %173 = sbr.rel (%p171) target = $region20
      $region19: #{basic_block_1d_forward.4} parent=11 // pred_region
        _
      $region20: #{basic_block_1d_forward.4} parent=11 // pred_fallthru
        _
      // Predicated region
      $region21: #{basic_block_1d_forward.4} parent=11 // pred_check
        %p174 = pneg %p101
      $region22: #{basic_block_1d_forward.4} parent=11 // pred_check_branch
        %176 = sbr.rel (%p174) target = $region24
      $region23: #{basic_block_1d_forward.4} parent=11 // pred_region
        _
      $region24: #{basic_block_1d_forward.4} parent=11 // pred_fallthru
        _
    $region12: #{basic_block_1d_forward.4} parent=5 // pred_fallthru
      _
    %p177 = scmp.lt.s32.totalorder %s12, 2
    // Predicated region
    $region25: #{basic_block_1d_forward.4} parent=5 // pred_check
      %p178 = pneg %p177
    $region26: #{basic_block_1d_forward.4} parent=5 // pred_check_branch
      %180 = sbr.rel (%p178) target = $region28
    $region27: #{basic_block_1d_forward.4} parent=5 // pred_region
      // Predicated region
      $region29: #{basic_block_1d_forward.4} parent=27 // pred_check
        %p181 = pneg %p32
      $region30: #{basic_block_1d_forward.4} parent=27 // pred_check_branch
        %183 = sbr.rel (%p181) target = $region32
      $region31: #{basic_block_1d_forward.4} parent=27 // pred_region
        %p184 = scmp.lt.s32.totalorder %s12, 1
        %s185 = scalar_select %p184, %s12, 1
        %s186 = smul.addr %s185, 4
        %s187 = scalar_lea.vmem %s0, %s186
      $region32: #{basic_block_1d_forward.4} parent=27 // pred_fallthru
        _
    $region28: #{basic_block_1d_forward.4} parent=5 // pred_fallthru
      _
    %p188 = scmp.le.s32.totalorder 1, %s12
    %p189 = scmp.lt.s32.totalorder %s12, 3
    %p190 = pnand %p188, %p189
    %p191 = pneg %p190
    // Predicated region
    $region33: #{basic_block_1d_forward.4} parent=5 // pred_check
      _
    $region34: #{basic_block_1d_forward.4} parent=5 // pred_check_branch
      %193 = sbr.rel (%p190) target = $region36
    $region35: #{basic_block_1d_forward.4} parent=5 // pred_region
      %s194 = ssub.s32 %s12, 1
      %p195 = scmp.lt.s32.totalorder %s17, 1
      %s196 = scalar_select %p195, %s17, 1
      %s197 = smul.addr %s196, 4
      %s198 = scalar_lea.vmem %s0, %s197
      %p199 = pneg %p38
      %p200 = pneg %p35
      %p201 = pneg %p59
      %p202 = pneg %p56
      %p203 = pneg %p80
      %p204 = pneg %p77
      %p205 = pneg %p101
      %p206 = pneg %p98
      %p207 = pneg %p127
      %p208 = pneg %p124
      %p209 = scmp.lt.s32.totalorder %s17, 1
      %s210 = scalar_select %p209, %s17, 1
      %s211 = smul.addr %s210, 4
      %s212 = scalar_lea.vmem %s4, %s211
      %p213 = pneg %p153
      %p214 = pneg %p150
      %p215 = scmp.lt.s32.totalorder %s17, 1
      %s216 = scalar_select %p215, %s17, 1
      %s217 = smul.addr %s216, 2
      %s218 = scalar_lea.vmem %s5, %s217
      %p219 = scmp.lt.s32.totalorder %s17, 1
      %s220 = scalar_select %p219, %s17, 1
      %s221 = smul.addr %s220, 4
      %s222 = scalar_lea.vmem %s0, %s221
      %p223 = scmp.lt.s32.totalorder %s17, 1
      %s224 = scalar_select %p223, %s17, 1
      %s225 = smul.addr %s224, 4
      %s226 = scalar_lea.vmem %s4, %s225
      %p227 = scmp.lt.s32.totalorder %s17, 1
      %s228 = scalar_select %p227, %s17, 1
      %s229 = smul.addr %s228, 2
      %s230 = scalar_lea.vmem %s5, %s229
      %v231 = vld [vmem:[%s222] sm:$0xf]
      %v232 = vunpack.c.l.bf16 %v231
      %v233 = vld [vmem:[%s2] sm:$0x1]
      %v235 = vlaneseq
      %v236 = vshrl.u32 %v235, 7
      %v237 = vsub.s32 0, %v236
      %v238 = vrot.slane %v233, %v237
      %v240 = vmul.f32 %v232, %v238
      %v241 = vld [vmem:[%s3] sm:$0x1]
      %v243 = vlaneseq
      %v244 = vshrl.u32 %v243, 7
      %v245 = vsub.s32 0, %v244
      %v246 = vrot.slane %v241, %v245
      %v248 = vadd.f32 %v240, %v246
      %v249 = vmax.f32 %v248, 0.0
      %vm250 = vcmask 64512
      %251 = vst.msk [vmem:[#allocation2] sm:$0xff] %vm250, 0.0
      %252 = vst.msk [vmem:[#allocation2 + $0x8] sm:$0xff] %vm250, 0.0
      %253 = vst.msk [vmem:[#allocation2 + $0x10] sm:$0xff] %vm250, 0.0
      %254 = vst.msk [vmem:[#allocation2 + $0x8] sm:$0xff] %vm250, %v249
      %v255 = vld [vmem:[#allocation2 + $0x7] sm:$0xff]
      %v256 = vld [vmem:[%s1] sm:$0xff]
      %s257 = scalar_lea.vmem %s1, 8
      %v258 = vld [vmem:[%s257] sm:$0xff]
      %v260 = vsel %vm250, %v249, 0
      %262 = vmatprep.subr.mxu0 0.0
      %263 = vmatpush1.msra.mxu0 %v258
      %264 = vmatprep.subr.mxu0 0.0
      %265 = vmatpush1.msra.mxu0 0.0
      %266 = vmatprep.subr.mxu0 0.0
      %267 = vmatpush1.msra.mxu0 0.0
      %268 = vmatprep.subr.mxu0 0.0
      %269 = vmatpush1.msra.mxu0 0.0
      %270 = vmatprep.subr.mxu0 0.0
      %271 = vmatpush1.msra.mxu0 0.0
      %272 = vmatprep.subr.mxu0 0.0
      %273 = vmatpush1.msra.mxu0 0.0
      %274 = vmatprep.subr.mxu0 0.0
      %275 = vmatpush1.msra.mxu0 0.0
      %276 = vmatprep.subr.mxu0 0.0
      %277 = vmatpush1.msra.mxu0 0.0
      %278 = vmatprep.subr.mxu0 0.0
      %279 = vmatpush1.msra.mxu0 0.0
      %280 = vmatprep.subr.mxu0 0.0
      %281 = vmatpush1.msra.mxu0 0.0
      %282 = vmatprep.subr.mxu0 0.0
      %283 = vmatpush1.msra.mxu0 0.0
      %284 = vmatprep.subr.mxu0 0.0
      %285 = vmatpush1.msra.mxu0 0.0
      %286 = vmatprep.subr.mxu0 0.0
      %287 = vmatpush1.msra.mxu0 0.0
      %288 = vmatprep.subr.mxu0 0.0
      %289 = vmatpush1.msra.mxu0 0.0
      %290 = vmatprep.subr.mxu0 0.0
      %291 = vmatpush1.msra.mxu0 0.0
      %292 = vmatprep.subr.mxu0 0.0
      %293 = vmatpush1.msra.mxu0 0.0
      %294 = vmatprep.subr.mxu0 0.0
      %295 = vmatpush1.msra.mxu0 0.0
      %296 = vmatprep.subr.mxu0 0.0
      %297 = vmatpush1.msra.mxu0 0.0
      %298 = vmatprep.subr.mxu0 0.0
      %299 = vmatpush1.msra.mxu0 0.0
      %300 = vmatprep.subr.mxu0 0.0
      %301 = vmatpush1.msra.mxu0 0.0
      %302 = vmatprep.subr.mxu0 0.0
      %303 = vmatpush1.msra.mxu0 0.0
      %304 = vmatprep.subr.mxu0 0.0
      %305 = vmatpush1.msra.mxu0 0.0
      %306 = vmatprep.subr.mxu0 0.0
      %307 = vmatpush1.msra.mxu0 0.0
      %308 = vmatprep.subr.mxu0 0.0
      %309 = vmatpush1.msra.mxu0 0.0
      %310 = vmatprep.subr.mxu0 0.0
      %311 = vmatpush1.msra.mxu0 0.0
      %312 = vmatprep.subr.mxu0 0.0
      %313 = vmatpush1.msra.mxu0 0.0
      %314 = vmatprep.subr.mxu0 0.0
      %315 = vmatpush1.msra.mxu0 0.0
      %316 = vmatprep.subr.mxu0 0.0
      %317 = vmatpush1.msra.mxu0 0.0
      %318 = vmatprep.subr.mxu0 0.0
      %319 = vmatpush1.msra.mxu0 0.0
      %320 = vmatprep.subr.mxu0 0.0
      %321 = vmatpush1.msra.mxu0 0.0
      %322 = vmatprep.subr.mxu0 0.0
      %323 = vmatpush1.msra.mxu0 0.0
      %324 = vmatprep.subr.mxu0 0.0
      %325 = vmatpush1.msra.mxu0 0.0
      %326 = vmatprep.mubr.f32.mxu0 0.0
      %327 = vmatmul.mubr.f32.gmra.mrb[0].mxu0 %v260
      %v328 = vpop.f32.mrb[0].mxu0
      %v329 = vadd.f32 0.0, %v328
      %v330 = vpop.f32.mrb[0].mxu0
      %331 = vdwg.mxu0
      %v333 = vsel %vm250, %v255, 0
      %335 = vmatprep.subr.mxu0 0.0
      %336 = vmatpush1.msra.mxu0 %v256
      %337 = vmatprep.subr.mxu0 0.0
      %338 = vmatpush1.msra.mxu0 0.0
      %339 = vmatprep.subr.mxu0 0.0
      %340 = vmatpush1.msra.mxu0 0.0
      %341 = vmatprep.subr.mxu0 0.0
      %342 = vmatpush1.msra.mxu0 0.0
      %343 = vmatprep.subr.mxu0 0.0
      %344 = vmatpush1.msra.mxu0 0.0
      %345 = vmatprep.subr.mxu0 0.0
      %346 = vmatpush1.msra.mxu0 0.0
      %347 = vmatprep.subr.mxu0 0.0
      %348 = vmatpush1.msra.mxu0 0.0
      %349 = vmatprep.subr.mxu0 0.0
      %350 = vmatpush1.msra.mxu0 0.0
      %351 = vmatprep.subr.mxu0 0.0
      %352 = vmatpush1.msra.mxu0 0.0
      %353 = vmatprep.subr.mxu0 0.0
      %354 = vmatpush1.msra.mxu0 0.0
      %355 = vmatprep.subr.mxu0 0.0
      %356 = vmatpush1.msra.mxu0 0.0
      %357 = vmatprep.subr.mxu0 0.0
      %358 = vmatpush1.msra.mxu0 0.0
      %359 = vmatprep.subr.mxu0 0.0
      %360 = vmatpush1.msra.mxu0 0.0
      %361 = vmatprep.subr.mxu0 0.0
      %362 = vmatpush1.msra.mxu0 0.0
      %363 = vmatprep.subr.mxu0 0.0
      %364 = vmatpush1.msra.mxu0 0.0
      %365 = vmatprep.subr.mxu0 0.0
      %366 = vmatpush1.msra.mxu0 0.0
      %367 = vmatprep.subr.mxu0 0.0
      %368 = vmatpush1.msra.mxu0 0.0
      %369 = vmatprep.subr.mxu0 0.0
      %370 = vmatpush1.msra.mxu0 0.0
      %371 = vmatprep.subr.mxu0 0.0
      %372 = vmatpush1.msra.mxu0 0.0
      %373 = vmatprep.subr.mxu0 0.0
      %374 = vmatpush1.msra.mxu0 0.0
      %375 = vmatprep.subr.mxu0 0.0
      %376 = vmatpush1.msra.mxu0 0.0
      %377 = vmatprep.subr.mxu0 0.0
      %378 = vmatpush1.msra.mxu0 0.0
      %379 = vmatprep.subr.mxu0 0.0
      %380 = vmatpush1.msra.mxu0 0.0
      %381 = vmatprep.subr.mxu0 0.0
      %382 = vmatpush1.msra.mxu0 0.0
      %383 = vmatprep.subr.mxu0 0.0
      %384 = vmatpush1.msra.mxu0 0.0
      %385 = vmatprep.subr.mxu0 0.0
      %386 = vmatpush1.msra.mxu0 0.0
      %387 = vmatprep.subr.mxu0 0.0
      %388 = vmatpush1.msra.mxu0 0.0
      %389 = vmatprep.subr.mxu0 0.0
      %390 = vmatpush1.msra.mxu0 0.0
      %391 = vmatprep.subr.mxu0 0.0
      %392 = vmatpush1.msra.mxu0 0.0
      %393 = vmatprep.subr.mxu0 0.0
      %394 = vmatpush1.msra.mxu0 0.0
      %395 = vmatprep.subr.mxu0 0.0
      %396 = vmatpush1.msra.mxu0 0.0
      %397 = vmatprep.subr.mxu0 0.0
      %398 = vmatpush1.msra.mxu0 0.0
      %399 = vmatprep.mubr.f32.mxu0 0.0
      %400 = vmatmul.mubr.f32.gmra.mrb[0].mxu0 %v333
      %v401 = vpop.f32.mrb[0].mxu0
      %v402 = vadd.f32 %v329, %v401
      %v403 = vpop.f32.mrb[0].mxu0
      %404 = vdwg.mxu0
      %v405 = vld [vmem:[#allocation2 + $0x9] sm:$0xff]
      %s406 = scalar_lea.vmem %s1, 16
      %v407 = vld [vmem:[%s406] sm:$0xff]
      %v409 = vsel %vm250, %v405, 0
      %411 = vmatprep.subr.mxu0 0.0
      %412 = vmatpush1.msra.mxu0 %v407
      %413 = vmatprep.subr.mxu0 0.0
      %414 = vmatpush1.msra.mxu0 0.0
      %415 = vmatprep.subr.mxu0 0.0
      %416 = vmatpush1.msra.mxu0 0.0
      %417 = vmatprep.subr.mxu0 0.0
      %418 = vmatpush1.msra.mxu0 0.0
      %419 = vmatprep.subr.mxu0 0.0
      %420 = vmatpush1.msra.mxu0 0.0
      %421 = vmatprep.subr.mxu0 0.0
      %422 = vmatpush1.msra.mxu0 0.0
      %423 = vmatprep.subr.mxu0 0.0
      %424 = vmatpush1.msra.mxu0 0.0
      %425 = vmatprep.subr.mxu0 0.0
      %426 = vmatpush1.msra.mxu0 0.0
      %427 = vmatprep.subr.mxu0 0.0
      %428 = vmatpush1.msra.mxu0 0.0
      %429 = vmatprep.subr.mxu0 0.0
      %430 = vmatpush1.msra.mxu0 0.0
      %431 = vmatprep.subr.mxu0 0.0
      %432 = vmatpush1.msra.mxu0 0.0
      %433 = vmatprep.subr.mxu0 0.0
      %434 = vmatpush1.msra.mxu0 0.0
      %435 = vmatprep.subr.mxu0 0.0
      %436 = vmatpush1.msra.mxu0 0.0
      %437 = vmatprep.subr.mxu0 0.0
      %438 = vmatpush1.msra.mxu0 0.0
      %439 = vmatprep.subr.mxu0 0.0
      %440 = vmatpush1.msra.mxu0 0.0
      %441 = vmatprep.subr.mxu0 0.0
      %442 = vmatpush1.msra.mxu0 0.0
      %443 = vmatprep.subr.mxu0 0.0
      %444 = vmatpush1.msra.mxu0 0.0
      %445 = vmatprep.subr.mxu0 0.0
      %446 = vmatpush1.msra.mxu0 0.0
      %447 = vmatprep.subr.mxu0 0.0
      %448 = vmatpush1.msra.mxu0 0.0
      %449 = vmatprep.subr.mxu0 0.0
      %450 = vmatpush1.msra.mxu0 0.0
      %451 = vmatprep.subr.mxu0 0.0
      %452 = vmatpush1.msra.mxu0 0.0
      %453 = vmatprep.subr.mxu0 0.0
      %454 = vmatpush1.msra.mxu0 0.0
      %455 = vmatprep.subr.mxu0 0.0
      %456 = vmatpush1.msra.mxu0 0.0
      %457 = vmatprep.subr.mxu0 0.0
      %458 = vmatpush1.msra.mxu0 0.0
      %459 = vmatprep.subr.mxu0 0.0
      %460 = vmatpush1.msra.mxu0 0.0
      %461 = vmatprep.subr.mxu0 0.0
      %462 = vmatpush1.msra.mxu0 0.0
      %463 = vmatprep.subr.mxu0 0.0
      %464 = vmatpush1.msra.mxu0 0.0
      %465 = vmatprep.subr.mxu0 0.0
      %466 = vmatpush1.msra.mxu0 0.0
      %467 = vmatprep.subr.mxu0 0.0
      %468 = vmatpush1.msra.mxu0 0.0
      %469 = vmatprep.subr.mxu0 0.0
      %470 = vmatpush1.msra.mxu0 0.0
      %471 = vmatprep.subr.mxu0 0.0
      %472 = vmatpush1.msra.mxu0 0.0
      %473 = vmatprep.subr.mxu0 0.0
      %474 = vmatpush1.msra.mxu0 0.0
      %475 = vmatprep.mubr.f32.mxu0 0.0
      %476 = vmatmul.mubr.f32.gmra.mrb[0].mxu0 %v409
      %v477 = vpop.f32.mrb[0].mxu0
      %v478 = vadd.f32 0.0, %v477
      %v479 = vpop.f32.mrb[0].mxu0
      %480 = vdwg.mxu0
      %v481 = vadd.f32 %v402, %v478
      %v482 = vpack.c.bf16 %v481, %v481
      %vm483 = vcmask 60416
      %484 = vst.msk [vmem:[%s226] sm:$0xf] %vm483, %v482
      %v485 = vsel %vm250, %v481, 0.0
      %v486 = vrot.slane %v485, 4
      %v487 = vadd.f32 %v485, %v486
      %v488 = vrot.slane %v487, 2
      %v489 = vadd.f32 %v487, %v488
      %v490 = vrot.slane %v489, 1
      %v491 = vadd.f32 %v489, %v490
      %vm492 = vcmask 57344
      %493 = vst.msk [vmem:[%s230] sm:$0x1] %vm492, %v491
      %v494 = vmul.f32 %v481, %v481
      %v495 = vsel %vm250, %v494, 0.0
      %v496 = vrot.slane %v495, 4
      %v497 = vadd.f32 %v495, %v496
      %v498 = vrot.slane %v497, 2
      %v499 = vadd.f32 %v497, %v498
      %v500 = vrot.slane %v499, 1
      %v501 = vadd.f32 %v499, %v500
      %502 = vst.msk [vmem:[%s230 + $0x1] sm:$0x1] %vm492, %v501
      %p503 = scmp.lt.s32.totalorder %s17, 1
      %s504 = scalar_select %p503, %s17, 1
      %s505 = smul.addr %s504, 4
      %s506 = scalar_lea.vmem %s4, %s505
      %p507 = scmp.lt.s32.totalorder %s17, 1
      %s508 = scalar_select %p507, %s17, 1
      %s509 = smul.addr %s508, 2
      %s510 = scalar_lea.vmem %s5, %s509
      // Predicated region
      $region37: #{basic_block_1d_forward.4} parent=35 // pred_check
        %p511 = pneg %p124
      $region38: #{basic_block_1d_forward.4} parent=35 // pred_check_branch
        %513 = sbr.rel (%p511) target = $region40
      $region39: #{basic_block_1d_forward.4} parent=35 // pred_region
        _
      $region40: #{basic_block_1d_forward.4} parent=35 // pred_fallthru
        _
      // Predicated region
      $region41: #{basic_block_1d_forward.4} parent=35 // pred_check
        %p514 = pneg %p150
      $region42: #{basic_block_1d_forward.4} parent=35 // pred_check_branch
        %516 = sbr.rel (%p514) target = $region44
      $region43: #{basic_block_1d_forward.4} parent=35 // pred_region
        _
      $region44: #{basic_block_1d_forward.4} parent=35 // pred_fallthru
        _
    $region36: #{basic_block_1d_forward.4} parent=5 // pred_fallthru
      _
    %p517 = scmp.le.s32.totalorder 2, %s12
    // Predicated region
    $region45: #{basic_block_1d_forward.4} parent=5 // pred_check
      %p518 = pneg %p517
    $region46: #{basic_block_1d_forward.4} parent=5 // pred_check_branch
      %520 = sbr.rel (%p518) target = $region48
    $region47: #{basic_block_1d_forward.4} parent=5 // pred_region
      %s521 = ssub.s32 %s12, 2
      // Predicated region
      $region49: #{basic_block_1d_forward.4} parent=47 // pred_check
        %p522 = pneg %p130
      $region50: #{basic_block_1d_forward.4} parent=47 // pred_check_branch
        %524 = sbr.rel (%p522) target = $region52
      $region51: #{basic_block_1d_forward.4} parent=47 // pred_region
        %p525 = scmp.lt.s32.totalorder %s18, 1
        %s526 = scalar_select %p525, %s18, 1
        %s527 = smul.addr %s526, 4
        %s528 = scalar_lea.vmem %s4, %s527
      $region52: #{basic_block_1d_forward.4} parent=47 // pred_fallthru
        _
      // Predicated region
      $region53: #{basic_block_1d_forward.4} parent=47 // pred_check
        %p529 = pneg %p156
      $region54: #{basic_block_1d_forward.4} parent=47 // pred_check_branch
        %531 = sbr.rel (%p529) target = $region56
      $region55: #{basic_block_1d_forward.4} parent=47 // pred_region
        %p532 = scmp.lt.s32.totalorder %s18, 1
        %s533 = scalar_select %p532, %s18, 1
        %s534 = smul.addr %s533, 2
        %s535 = scalar_lea.vmem %s5, %s534
      $region56: #{basic_block_1d_forward.4} parent=47 // pred_fallthru
        _
    $region48: #{basic_block_1d_forward.4} parent=5 // pred_fallthru
      _
  $region6: #{basic_block_1d_forward.4} parent=0 // loop_footer
    %s16 = sadd.s32 1, %s12
  $region7: #{basic_block_1d_forward.4} parent=0 // loop_footer_branch
    %11 = sbr.rel target = $region3
  $region8: #{basic_block_1d_forward.4} parent=0 // loop_exit
    _

</llo_original>
